<compile_context>
chip_gen: v5e
topology: v5e:2x2
jax: 0.10.0
libtpu: 0.0.40
codegen_flags: <defaults>
</compile_context>

<pallas_src>
import jax
import jax.numpy as jnp
import numpy as np
from jax.experimental import pallas as pl
from jax.experimental.pallas import tpu as pltpu


# --------------------------------------------------------------------------
# Phase 1: coordinate pooling + attention-map computation
# --------------------------------------------------------------------------
def _pool_attention_kernel(x_ref, w1t_ref, b1r_ref, wht_ref, bhr_ref,
                           wwt_ref, bwr_ref, ah_ref, aw_ref, ph_ref, pw_ref):
    # x_ref : (1, C, th, W) tile of the input (rows [t*th, t*th+th) of H)
    # ph_ref: (H, C) scratch -- x pooled (mean) over W, one row per H position
    # pw_ref: (W, C) scratch -- x pooled (mean) over H, accumulated over tiles
    t = pl.program_id(1)
    n_t = pl.num_programs(1)
    th = x_ref.shape[2]
    W = x_ref.shape[3]
    H = ah_ref.shape[2]

    x = x_ref[0]                                      # (C, th, W) f32

    @pl.when(t == 0)
    def _init():
        pw_ref[...] = jnp.zeros_like(pw_ref)

    # Mean over W for this tile's H rows -> rows [t*th, t*th+th) of ph.
    row_mean = jnp.sum(x, axis=2) * (1.0 / W)         # (C, th)
    ph_ref[pl.ds(pl.multiple_of(t * th, th), th), :] = row_mean.T

    # Partial mean over H (accumulated across H tiles).
    pw_ref[...] += jnp.sum(x, axis=1).T * (1.0 / H)   # (W, C)

    @pl.when(t == n_t - 1)
    def _finalize():
        # conv1 (eval-mode BN folded into w1t/b1r) + h_swish, applied per
        # position -- identical to the PyTorch concat path since conv1 is 1x1.
        def _mid(z):                                  # z: (L, C)
            v = jnp.dot(z, w1t_ref[...],
                        preferred_element_type=jnp.float32) + b1r_ref[...]   # (L, mid)
            return v * jnp.clip(v + 3.0, 0.0, 6.0) * (1.0 / 6.0)             # h_swish

        vh = _mid(ph_ref[...])                        # (H, mid)
        vw = _mid(pw_ref[...])                        # (W, mid)
        ah = jax.nn.sigmoid(
            jnp.dot(vh, wht_ref[...],
                    preferred_element_type=jnp.float32) + bhr_ref[...])      # (H, C)
        aw = jax.nn.sigmoid(
            jnp.dot(vw, wwt_ref[...],
                    preferred_element_type=jnp.float32) + bwr_ref[...])      # (W, C)
        ah_ref[0] = ah.T                              # (C, H)
        aw_ref[0] = aw.T                              # (C, W)


# --------------------------------------------------------------------------
# Phase 2: lane-dense elementwise apply  out = x * att_h * att_w
#   Selectors are built in-kernel (no HBM selector traffic at all).
# --------------------------------------------------------------------------
def _apply_kernel(x_ref, ah_ref, aw_ref, o_ref):
    # x_ref/o_ref : (1, cb, hw_t)  flat-spatial tiles (lane-dense last dim)
    # ah_ref      : (1, cb, H)     aw_ref : (1, cb, W)
    cb = x_ref.shape[1]
    hw_t = x_ref.shape[2]
    H = ah_ref.shape[2]
    W = aw_ref.shape[2]
    fW = float(W)

    # Flat spatial index of every lane in this tile (exact integers in f32).
    l0 = pl.program_id(2) * hw_t
    l = (jax.lax.broadcasted_iota(jnp.int32, (H, hw_t), 1) + l0).astype(jnp.float32)
    hW = jax.lax.broadcasted_iota(jnp.int32, (H, hw_t), 0).astype(jnp.float32) * fW

    # eh[h, j] = 1 iff flat index l(j) lies in row h  (compare-only, no div/mod)
    in_row = jnp.logical_and(l >= hW, l < hW + fW)
    eh = jnp.where(in_row, 1.0, 0.0).astype(jnp.bfloat16)                 # (H, hw_t)

    # w(l) = l - W*(l // W); recover W*(l // W) from the one-hot rows (exact).
    hW_of_l = jnp.sum(jnp.where(in_row, hW, 0.0), axis=0, keepdims=True)  # (1, hw_t)
    w_of_l = l[0:1, :] - hW_of_l                                          # (1, hw_t)
    wid = jax.lax.broadcasted_iota(jnp.int32, (W, hw_t), 0).astype(jnp.float32)
    ew = jnp.where(jnp.broadcast_to(w_of_l, (W, hw_t)) == wid,
                   1.0, 0.0).astype(jnp.bfloat16)                         # (W, hw_t)

    def expand(a, e):
        # Expand per-row / per-column attention onto the flat H*W lane layout
        # with two single-pass bf16 MXU matmuls (hi/lo split keeps ~2^-17 rel
        # accuracy; the 0/1 selector makes every product exact).
        hi = a.astype(jnp.bfloat16)
        lo = (a - hi.astype(jnp.float32)).astype(jnp.bfloat16)
        return (jnp.dot(hi, e, preferred_element_type=jnp.float32) +
                jnp.dot(lo, e, preferred_element_type=jnp.float32))

    att = expand(ah_ref[0], eh) * expand(aw_ref[0], ew)                   # (cb, hw_t)
    o_ref[0] = (x_ref[0].astype(jnp.float32) * att).astype(o_ref.dtype)


# --------------------------------------------------------------------------
# Wrapper helpers
# --------------------------------------------------------------------------
def _vmem_capacity_bytes():
    try:
        info = pltpu.get_tpu_info()
        cap = getattr(info, "vmem_capacity_bytes", None)
        if cap:
            return int(cap)
    except Exception:
        pass
    return 64 << 20   # conservative default (v7x per-core VMEM)


def _pad_bytes(shape, itemsize=4):
    """VMEM footprint of a block after (8, 128) tile padding of the minor dims."""
    s = list(shape)
    s[-1] = -(-s[-1] // 128) * 128
    if len(s) >= 2:
        s[-2] = -(-s[-2] // 8) * 8
    n = 1
    for d in s:
        n *= d
    return n * itemsize


def _pick_tile(n, unit_bytes, max_bytes, multiple):
    """Largest divisor of n that is a multiple of `multiple` and fits the byte
    budget; falls back to the smallest valid multiple, or to n itself (a block
    extent equal to the full dim is always layout-legal)."""
    cands = [d for d in range(multiple, n + 1, multiple) if n % d == 0]
    if not cands:
        return n
    fitting = [d for d in cands if d * unit_bytes <= max_bytes]
    return max(fitting) if fitting else min(cands)


# --------------------------------------------------------------------------
# Wrapper
# --------------------------------------------------------------------------
def coor_attention(x, params, *, max_block_bytes=None, out_dtype=None):
    """x: (B, C, H, W) float32.  params: dict of module weights (see make_params).

    out_dtype=jnp.bfloat16 enables the bf16 HBM-I/O path for the apply pass
    (x cast once, bf16 output, attention math stays f32)."""
    B, C, H, W = x.shape
    mid = params["w1"].shape[0]
    assert params["wh"].shape[0] == C, "CoorAttention requires out_channels == in_channels"
    HW = H * W
    f32 = jnp.float32
    io16 = (out_dtype == jnp.bfloat16)
    out_dtype = jnp.bfloat16 if io16 else f32

    # Generation-aware budgets (v5e/v6e: 128 MiB VMEM -> ~6 MiB blocks;
    # v7x: 64 MiB VMEM -> ~3 MiB blocks).
    cap = _vmem_capacity_bytes()
    vmem_cap = int(0.85 * cap)
    if max_block_bytes is None:
        max_block_bytes = (6 << 20) if cap >= (100 << 20) else (3 << 20)

    # ---- Fold eval-mode BatchNorm (and conv1 bias) into conv1 (host, free) ----
    w1f = params["bn_scale"] * params["w1"]                          # (mid, C)
    b1f = params["bn_scale"] * params["b1"] + params["bn_shift"]     # (mid, 1)

    # Transposed weight layouts for the in-kernel matmuls (C on lanes).
    w1t = w1f.T.astype(f32)            # (C, mid)
    b1r = b1f.T.astype(f32)            # (1, mid)
    wht = params["wh"].T.astype(f32)   # (mid, C)
    bhr = params["bh"].T.astype(f32)   # (1, C)
    wwt = params["ww"].T.astype(f32)   # (mid, C)
    bwr = params["bw"].T.astype(f32)   # (1, C)

    # -------------------- phase 1: pooling + attention maps --------------------
    Wpad = -(-W // 128) * 128
    w_small = (_pad_bytes((C, mid)) + _pad_bytes((1, mid))
               + 2 * (_pad_bytes((mid, C)) + _pad_bytes((1, C))))
    out1 = _pad_bytes((C, H)) + _pad_bytes((C, W))
    scr1 = _pad_bytes((H, C)) + _pad_bytes((W, C))

    budget = max_block_bytes
    while True:
        th = _pick_tile(H, C * Wpad * 4, budget, 8)
        blk1 = C * (-(-th // 8) * 8) * Wpad * 4
        need1 = 2 * (blk1 + w_small + out1) + scr1 + (4 << 20)
        if need1 <= vmem_cap or budget <= (64 << 10):
            break
        budget //= 2
    if need1 > vmem_cap:
        raise ValueError(f"CoorAttention phase-1 tiles need ~{need1} B of VMEM "
                         f"(> {vmem_cap} B available on this TPU generation)")
    n_t = H // th
    vmem1 = int(min(max(need1, 32 << 20), vmem_cap))

    attn_h, attn_w = pl.pallas_call(
        _pool_attention_kernel,
        out_shape=(jax.ShapeDtypeStruct((B, C, H), f32),
                   jax.ShapeDtypeStruct((B, C, W), f32)),
        grid=(B, n_t),
        in_specs=[
            pl.BlockSpec((1, C, th, W), lambda b, t: (b, 0, t, 0)),   # x tile
            pl.BlockSpec((C, mid), lambda b, t: (0, 0)),              # conv1.T (BN folded)
            pl.BlockSpec((1, mid), lambda b, t: (0, 0)),              # conv1 bias row
            pl.BlockSpec((mid, C), lambda b, t: (0, 0)),              # conv_h.T
            pl.BlockSpec((1, C), lambda b, t: (0, 0)),                # conv_h bias row
            pl.BlockSpec((mid, C), lambda b, t: (0, 0)),              # conv_w.T
            pl.BlockSpec((1, C), lambda b, t: (0, 0)),                # conv_w bias row
        ],
        out_specs=(pl.BlockSpec((1, C, H), lambda b, t: (b, 0, 0)),
                   pl.BlockSpec((1, C, W), lambda b, t: (b, 0, 0))),
        scratch_shapes=[pltpu.VMEM((H, C), f32), pltpu.VMEM((W, C), f32)],
        compiler_params=pltpu.CompilerParams(
            dimension_semantics=("parallel", "arbitrary"),
            vmem_limit_bytes=vmem1),
    )(x, w1t, b1r, wht, bhr, wwt, bwr)

    # ------------------ phase 2: apply attention (lane-dense) ------------------
    io_bytes = 2 if io16 else 4
    cmul = 16 if io16 else 8            # bf16 packs sublanes in pairs
    x3 = x.reshape(B, C, HW)            # free reshape: merges contiguous trailing dims
    x3_io = x3.astype(jnp.bfloat16) if io16 else x3

    budget = max_block_bytes
    while True:
        cb = _pick_tile(C, HW * io_bytes, budget, cmul)
        hw_t = _pick_tile(HW, cb * io_bytes, budget, 128)
        cbp = -(-cb // 8) * 8
        hwp = -(-hw_t // 128) * 128
        blk2_io = cbp * hwp * io_bytes                              # one x or out tile
        blk2_att = _pad_bytes((cb, H)) + _pad_bytes((cb, W))
        tmp2 = (H + W) * hwp * 4 * 4 + 3 * cbp * hwp * 4            # in-kernel temporaries
        need2 = 2 * (2 * blk2_io + blk2_att) + tmp2 + (4 << 20)
        if need2 <= vmem_cap or budget <= (64 << 10):
            break
        budget //= 2
    if need2 > vmem_cap:
        raise ValueError(f"CoorAttention phase-2 tiles need ~{need2} B of VMEM "
                         f"(> {vmem_cap} B available on this TPU generation)")
    n_c = C // cb
    n_s = HW // hw_t
    vmem2 = int(min(max(need2, 32 << 20), vmem_cap))

    out3 = pl.pallas_call(
        _apply_kernel,
        out_shape=jax.ShapeDtypeStruct((B, C, HW), out_dtype),
        grid=(B, n_c, n_s),
        in_specs=[
            pl.BlockSpec((1, cb, hw_t), lambda b, c, s: (b, c, s)),   # x (flat)
            pl.BlockSpec((1, cb, H), lambda b, c, s: (b, c, 0)),      # att_h (resident over s)
            pl.BlockSpec((1, cb, W), lambda b, c, s: (b, c, 0)),      # att_w (resident over s)
        ],
        out_specs=pl.BlockSpec((1, cb, hw_t), lambda b, c, s: (b, c, s)),
        compiler_params=pltpu.CompilerParams(
            dimension_semantics=("parallel", "parallel", "parallel"),
            vmem_limit_bytes=vmem2),
    )(x3_io, attn_h, attn_w)

    return out3.reshape(B, C, H, W)


# --------------------------------------------------------------------------
# Pure-JAX reference mirroring the PyTorch forward (eval-mode BN)
# --------------------------------------------------------------------------
def coor_attention_reference(x, params):
    x_h = jnp.mean(x, axis=3)                               # (B, C, H)
    x_w = jnp.mean(x, axis=2)                               # (B, C, W)

    def mid(z):                                             # z: (B, C, L)
        v = jnp.einsum("mc,bcl->bml", params["w1"], z) + params["b1"][None]
        v = v * params["bn_scale"][None] + params["bn_shift"][None]
        return v * jnp.clip(v + 3.0, 0.0, 6.0) / 6.0

    y_h = mid(x_h)
    y_w = mid(x_w)
    att_h = jax.nn.sigmoid(
        jnp.einsum("om,bml->bol", params["wh"], y_h) + params["bh"][None])
    att_w = jax.nn.sigmoid(
        jnp.einsum("om,bml->bol", params["ww"], y_w) + params["bw"][None])
    return x * att_h[:, :, :, None] * att_w[:, :, None, :]


def make_params(key, in_channels, out_channels, reduction=32):
    mid = max(8, in_channels // reduction)
    ks = jax.random.split(key, 8)
    return {
        "w1": 0.1 * jax.random.normal(ks[0], (mid, in_channels), jnp.float32),
        "b1": 0.1 * jax.random.normal(ks[1], (mid, 1), jnp.float32),
        # eval-mode BN folded to affine: scale = gamma/sqrt(var+eps), shift = beta - mean*scale
        "bn_scale": 1.0 + 0.05 * jax.random.normal(ks[2], (mid, 1), jnp.float32),
        "bn_shift": 0.05 * jax.random.normal(ks[3], (mid, 1), jnp.float32),
        "wh": 0.1 * jax.random.normal(ks[4], (out_channels, mid), jnp.float32),
        "bh": 0.1 * jax.random.normal(ks[5], (out_channels, 1), jnp.float32),
        "ww": 0.1 * jax.random.normal(ks[6], (out_channels, mid), jnp.float32),
        "bw": 0.1 * jax.random.normal(ks[7], (out_channels, 1), jnp.float32),
    }


if __name__ == "__main__":
    B, C, H, W = 2, 16, 16, 16            # out_channels == in_channels == C
    key = jax.random.PRNGKey(0)
    kx, kp = jax.random.split(key)
    x = jax.random.normal(kx, (B, C, H, W), jnp.float32)
    params = make_params(kp, in_channels=C, out_channels=C, reduction=32)

    ref = coor_attention_reference(x, params)

    # Default tiling (generation-aware block budget).
    out = jax.block_until_ready(coor_attention(x, params))
    np.testing.assert_allclose(np.asarray(out), np.asarray(ref),
                               rtol=1e-4, atol=1e-4)

    # Tiny block budget: forces multi-tile grids in both kernels, exercising the
    # H-tiled pooling accumulation and the (C, HW) tiling / in-kernel selector
    # offsets (program_id(2) > 0) of the apply pass.
    out_tiled = jax.block_until_ready(
        coor_attention(x, params, max_block_bytes=4096))
    np.testing.assert_allclose(np.asarray(out_tiled), np.asarray(ref),
                               rtol=1e-4, atol=1e-4)

    # Optional bf16 HBM-I/O path for the apply pass (attention math stays f32).
    out_bf16 = jax.block_until_ready(
        coor_attention(x, params, out_dtype=jnp.bfloat16))
    np.testing.assert_allclose(np.asarray(out_bf16.astype(jnp.float32)),
                               np.asarray(ref), rtol=5e-2, atol=5e-2)

    print("KERNEL_OK")
</pallas_src>

<mosaic_0001>
module attributes {stable_mosaic.version = 11 : i64} {
  func.func @_pool_attention_kernel(%arg0: i32, %arg1: i32, %arg2: memref<1x16x16x16xf32, #tpu.memory_space<vmem>>, %arg3: memref<16x8xf32, #tpu.memory_space<vmem>>, %arg4: memref<1x8xf32, #tpu.memory_space<vmem>>, %arg5: memref<8x16xf32, #tpu.memory_space<vmem>>, %arg6: memref<1x16xf32, #tpu.memory_space<vmem>>, %arg7: memref<8x16xf32, #tpu.memory_space<vmem>>, %arg8: memref<1x16xf32, #tpu.memory_space<vmem>>, %arg9: memref<1x16x16xf32, #tpu.memory_space<vmem>>, %arg10: memref<1x16x16xf32, #tpu.memory_space<vmem>>, %arg11: memref<16x16xf32, #tpu.memory_space<vmem>>, %arg12: memref<16x16xf32, #tpu.memory_space<vmem>>) attributes {dimension_semantics = [#tpu.dimension_semantics<parallel>, #tpu.dimension_semantics<arbitrary>], iteration_bounds = array<i64: 2, 1>, scalar_prefetch = 0 : i64, scratch_operands = 2 : i64, tpu.core_type = #tpu.core_type<tc>, window_params = [{transform_indices = @transform_0, window_bounds = array<i64: 1, 16, 16, 16>}, {pipeline_mode = #tpu.pipeline_mode<synchronous>, transform_indices = @transform_1, window_bounds = array<i64: 16, 8>}, {pipeline_mode = #tpu.pipeline_mode<synchronous>, transform_indices = @transform_2, window_bounds = array<i64: 1, 8>}, {pipeline_mode = #tpu.pipeline_mode<synchronous>, transform_indices = @transform_3, window_bounds = array<i64: 8, 16>}, {pipeline_mode = #tpu.pipeline_mode<synchronous>, transform_indices = @transform_4, window_bounds = array<i64: 1, 16>}, {pipeline_mode = #tpu.pipeline_mode<synchronous>, transform_indices = @transform_5, window_bounds = array<i64: 8, 16>}, {pipeline_mode = #tpu.pipeline_mode<synchronous>, transform_indices = @transform_6, window_bounds = array<i64: 1, 16>}, {transform_indices = @transform_7, window_bounds = array<i64: 1, 16, 16>}, {transform_indices = @transform_8, window_bounds = array<i64: 1, 16, 16>}]} {
    %c0 = arith.constant 0 : index
    %c0_0 = arith.constant 0 : index
    %c0_1 = arith.constant 0 : index
    %c0_2 = arith.constant 0 : index
    %0 = vector.load %arg2[%c0, %c0_0, %c0_1, %c0_2] : memref<1x16x16x16xf32, #tpu.memory_space<vmem>>, vector<1x16x16x16xf32>
    %1 = vector.shape_cast %0 : vector<1x16x16x16xf32> to vector<16x16x16xf32>
    %c0_i32 = arith.constant 0 : i32
    %2 = arith.cmpi eq, %arg1, %c0_i32 : i32
    %3 = arith.extui %2 : i1 to i32
    %c0_i32_3 = arith.constant 0 : i32
    %4 = arith.cmpi ne, %3, %c0_i32_3 : i32
    scf.if %4 {
      %cst_14 = arith.constant 0.000000e+00 : f32
      %23 = vector.broadcast %cst_14 : f32 to vector<16x16xf32>
      %c0_15 = arith.constant 0 : index
      %c0_16 = arith.constant 0 : index
      %24 = vector.load %arg12[%c0_15, %c0_16] : memref<16x16xf32, #tpu.memory_space<vmem>>, vector<16x16xf32>
      tpu.vector_store %arg12[%c0_15, %c0_16], %23 {strides = array<i32>} : memref<16x16xf32, #tpu.memory_space<vmem>>, vector<16x16xf32>,
    } else {
    }
    %cst = arith.constant dense<0.000000e+00> : vector<16x16xf32>
    %5 = vector.multi_reduction <add>, %1, %cst [2] : vector<16x16x16xf32> to vector<16x16xf32>
    %cst_4 = arith.constant 6.250000e-02 : f32
    %6 = vector.broadcast %cst_4 : f32 to vector<16x16xf32>
    %7 = arith.mulf %5, %6 : vector<16x16xf32>
    %8 = tpu.transpose %7, [1, 0] : vector<16x16xf32> -> vector<16x16xf32>
    %c16_i32 = arith.constant 16 : i32
    %9 = arith.muli %arg1, %c16_i32 : i32
    %10 = tpu.assume_multiple %9, 16 : i32
    %11 = arith.index_cast %10 : i32 to index
    %c0_5 = arith.constant 0 : index
    %12 = vector.load %arg11[%11, %c0_5] : memref<16x16xf32, #tpu.memory_space<vmem>>, vector<16x16xf32>
    tpu.vector_store %arg11[%11, %c0_5], %8 {strides = array<i32>} : memref<16x16xf32, #tpu.memory_space<vmem>>, vector<16x16xf32>,
    %c0_6 = arith.constant 0 : index
    %c0_7 = arith.constant 0 : index
    %13 = vector.load %arg12[%c0_6, %c0_7] : memref<16x16xf32, #tpu.memory_space<vmem>>, vector<16x16xf32>
    %cst_8 = arith.constant dense<0.000000e+00> : vector<16x16xf32>
    %14 = vector.multi_reduction <add>, %1, %cst_8 [1] : vector<16x16x16xf32> to vector<16x16xf32>
    %15 = tpu.transpose %14, [1, 0] : vector<16x16xf32> -> vector<16x16xf32>
    %cst_9 = arith.constant 6.250000e-02 : f32
    %16 = vector.broadcast %cst_9 : f32 to vector<16x16xf32>
    %17 = arith.mulf %15, %16 : vector<16x16xf32>
    %18 = arith.addf %13, %17 : vector<16x16xf32>
    %c0_10 = arith.constant 0 : index
    %c0_11 = arith.constant 0 : index
    %19 = vector.load %arg12[%c0_10, %c0_11] : memref<16x16xf32, #tpu.memory_space<vmem>>, vector<16x16xf32>
    tpu.vector_store %arg12[%c0_10, %c0_11], %18 {strides = array<i32>} : memref<16x16xf32, #tpu.memory_space<vmem>>, vector<16x16xf32>,
    %c0_i32_12 = arith.constant 0 : i32
    %20 = arith.cmpi eq, %arg1, %c0_i32_12 : i32
    %21 = arith.extui %20 : i1 to i32
    %c0_i32_13 = arith.constant 0 : i32
    %22 = arith.cmpi ne, %21, %c0_i32_13 : i32
    scf.if %22 {
      %c0_14 = arith.constant 0 : index
      %c0_15 = arith.constant 0 : index
      %23 = vector.load %arg11[%c0_14, %c0_15] : memref<16x16xf32, #tpu.memory_space<vmem>>, vector<16x16xf32>
      %c0_16 = arith.constant 0 : index
      %c0_17 = arith.constant 0 : index
      %24 = vector.load %arg3[%c0_16, %c0_17] : memref<16x8xf32, #tpu.memory_space<vmem>>, vector<16x8xf32>
      %cst_18 = arith.constant dense<0.000000e+00> : vector<16x8xf32>
      %25 = tpu.matmul %23, %24, %cst_18 {dimension_numbers = #tpu.dot_dimension_numbers<[1], [0], [0], [1], [0, 0, 1, 1], [], []>} : vector<16x16xf32>, vector<16x8xf32>, vector<16x8xf32> -> vector<16x8xf32>
      %c0_19 = arith.constant 0 : index
      %c0_20 = arith.constant 0 : index
      %26 = vector.load %arg4[%c0_19, %c0_20] : memref<1x8xf32, #tpu.memory_space<vmem>>, vector<1x8xf32>
      %27 = vector.broadcast %26 : vector<1x8xf32> to vector<16x8xf32>
      %28 = arith.addf %25, %27 : vector<16x8xf32>
      %cst_21 = arith.constant 3.000000e+00 : f32
      %29 = vector.broadcast %cst_21 : f32 to vector<16x8xf32>
      %30 = arith.addf %28, %29 : vector<16x8xf32>
      %cst_22 = arith.constant 0.000000e+00 : f32
      %cst_23 = arith.constant 6.000000e+00 : f32
      %31 = vector.broadcast %cst_22 : f32 to vector<16x8xf32>
      %32 = arith.maximumf %31, %30 : vector<16x8xf32>
      %33 = vector.broadcast %cst_23 : f32 to vector<16x8xf32>
      %34 = arith.minimumf %33, %32 : vector<16x8xf32>
      %35 = arith.mulf %28, %34 : vector<16x8xf32>
      %cst_24 = arith.constant 0.166666672 : f32
      %36 = vector.broadcast %cst_24 : f32 to vector<16x8xf32>
      %37 = arith.mulf %35, %36 : vector<16x8xf32>
      %c0_25 = arith.constant 0 : index
      %c0_26 = arith.constant 0 : index
      %38 = vector.load %arg12[%c0_25, %c0_26] : memref<16x16xf32, #tpu.memory_space<vmem>>, vector<16x16xf32>
      %c0_27 = arith.constant 0 : index
      %c0_28 = arith.constant 0 : index
      %39 = vector.load %arg3[%c0_27, %c0_28] : memref<16x8xf32, #tpu.memory_space<vmem>>, vector<16x8xf32>
      %cst_29 = arith.constant dense<0.000000e+00> : vector<16x8xf32>
      %40 = tpu.matmul %38, %39, %cst_29 {dimension_numbers = #tpu.dot_dimension_numbers<[1], [0], [0], [1], [0, 0, 1, 1], [], []>} : vector<16x16xf32>, vector<16x8xf32>, vector<16x8xf32> -> vector<16x8xf32>
      %c0_30 = arith.constant 0 : index
      %c0_31 = arith.constant 0 : index
      %41 = vector.load %arg4[%c0_30, %c0_31] : memref<1x8xf32, #tpu.memory_space<vmem>>, vector<1x8xf32>
      %42 = vector.broadcast %41 : vector<1x8xf32> to vector<16x8xf32>
      %43 = arith.addf %40, %42 : vector<16x8xf32>
      %cst_32 = arith.constant 3.000000e+00 : f32
      %44 = vector.broadcast %cst_32 : f32 to vector<16x8xf32>
      %45 = arith.addf %43, %44 : vector<16x8xf32>
      %cst_33 = arith.constant 0.000000e+00 : f32
      %cst_34 = arith.constant 6.000000e+00 : f32
      %46 = vector.broadcast %cst_33 : f32 to vector<16x8xf32>
      %47 = arith.maximumf %46, %45 : vector<16x8xf32>
      %48 = vector.broadcast %cst_34 : f32 to vector<16x8xf32>
      %49 = arith.minimumf %48, %47 : vector<16x8xf32>
      %50 = arith.mulf %43, %49 : vector<16x8xf32>
      %cst_35 = arith.constant 0.166666672 : f32
      %51 = vector.broadcast %cst_35 : f32 to vector<16x8xf32>
      %52 = arith.mulf %50, %51 : vector<16x8xf32>
      %c0_36 = arith.constant 0 : index
      %c0_37 = arith.constant 0 : index
      %53 = vector.load %arg5[%c0_36, %c0_37] : memref<8x16xf32, #tpu.memory_space<vmem>>, vector<8x16xf32>
      %cst_38 = arith.constant dense<0.000000e+00> : vector<16x16xf32>
      %54 = tpu.matmul %37, %53, %cst_38 {dimension_numbers = #tpu.dot_dimension_numbers<[1], [0], [0], [1], [0, 0, 1, 1], [], []>} : vector<16x8xf32>, vector<8x16xf32>, vector<16x16xf32> -> vector<16x16xf32>
      %c0_39 = arith.constant 0 : index
      %c0_40 = arith.constant 0 : index
      %55 = vector.load %arg6[%c0_39, %c0_40] : memref<1x16xf32, #tpu.memory_space<vmem>>, vector<1x16xf32>
      %56 = vector.broadcast %55 : vector<1x16xf32> to vector<16x16xf32>
      %57 = arith.addf %54, %56 : vector<16x16xf32>
      %58 = arith.negf %57 : vector<16x16xf32>
      %59 = math.exp %58 : vector<16x16xf32>
      %cst_41 = arith.constant 1.000000e+00 : f32
      %60 = vector.broadcast %cst_41 : f32 to vector<16x16xf32>
      %61 = arith.addf %60, %59 : vector<16x16xf32>
      %62 = arith.divf %60, %61 : vector<16x16xf32>
      %c0_42 = arith.constant 0 : index
      %c0_43 = arith.constant 0 : index
      %63 = vector.load %arg7[%c0_42, %c0_43] : memref<8x16xf32, #tpu.memory_space<vmem>>, vector<8x16xf32>
      %cst_44 = arith.constant dense<0.000000e+00> : vector<16x16xf32>
      %64 = tpu.matmul %52, %63, %cst_44 {dimension_numbers = #tpu.dot_dimension_numbers<[1], [0], [0], [1], [0, 0, 1, 1], [], []>} : vector<16x8xf32>, vector<8x16xf32>, vector<16x16xf32> -> vector<16x16xf32>
      %c0_45 = arith.constant 0 : index
      %c0_46 = arith.constant 0 : index
      %65 = vector.load %arg8[%c0_45, %c0_46] : memref<1x16xf32, #tpu.memory_space<vmem>>, vector<1x16xf32>
      %66 = vector.broadcast %65 : vector<1x16xf32> to vector<16x16xf32>
      %67 = arith.addf %64, %66 : vector<16x16xf32>
      %68 = arith.negf %67 : vector<16x16xf32>
      %69 = math.exp %68 : vector<16x16xf32>
      %cst_47 = arith.constant 1.000000e+00 : f32
      %70 = vector.broadcast %cst_47 : f32 to vector<16x16xf32>
      %71 = arith.addf %70, %69 : vector<16x16xf32>
      %72 = arith.divf %70, %71 : vector<16x16xf32>
      %73 = tpu.transpose %62, [1, 0] : vector<16x16xf32> -> vector<16x16xf32>
      %c0_48 = arith.constant 0 : index
      %c0_49 = arith.constant 0 : index
      %c0_50 = arith.constant 0 : index
      %74 = vector.load %arg9[%c0_48, %c0_49, %c0_50] : memref<1x16x16xf32, #tpu.memory_space<vmem>>, vector<1x16x16xf32>
      %75 = vector.shape_cast %74 : vector<1x16x16xf32> to vector<16x16xf32>
      %76 = vector.shape_cast %73 : vector<16x16xf32> to vector<1x16x16xf32>
      tpu.vector_store %arg9[%c0_48, %c0_49, %c0_50], %76 {strides = array<i32>} : memref<1x16x16xf32, #tpu.memory_space<vmem>>, vector<1x16x16xf32>,
      %77 = tpu.transpose %72, [1, 0] : vector<16x16xf32> -> vector<16x16xf32>
      %c0_51 = arith.constant 0 : index
      %c0_52 = arith.constant 0 : index
      %c0_53 = arith.constant 0 : index
      %78 = vector.load %arg10[%c0_51, %c0_52, %c0_53] : memref<1x16x16xf32, #tpu.memory_space<vmem>>, vector<1x16x16xf32>
      %79 = vector.shape_cast %78 : vector<1x16x16xf32> to vector<16x16xf32>
      %80 = vector.shape_cast %77 : vector<16x16xf32> to vector<1x16x16xf32>
      tpu.vector_store %arg10[%c0_51, %c0_52, %c0_53], %80 {strides = array<i32>} : memref<1x16x16xf32, #tpu.memory_space<vmem>>, vector<1x16x16xf32>,
    } else {
    }
    return
  }
  func.func @transform_0(%arg0: i32, %arg1: i32) -> (i32, i32, i32, i32) {
    %c0_i32 = arith.constant 0 : i32
    %c0_i32_0 = arith.constant 0 : i32
    %c0_i32_1 = arith.constant 0 : i32
    return %arg0, %c0_i32, %arg1, %c0_i32_0 : i32, i32, i32, i32
  }
  func.func @transform_1(%arg0: i32, %arg1: i32) -> (i32, i32) {
    %c0_i32 = arith.constant 0 : i32
    %c0_i32_0 = arith.constant 0 : i32
    %c0_i32_1 = arith.constant 0 : i32
    return %c0_i32, %c0_i32_0 : i32, i32
  }
  func.func @transform_2(%arg0: i32, %arg1: i32) -> (i32, i32) {
    %c0_i32 = arith.constant 0 : i32
    %c0_i32_0 = arith.constant 0 : i32
    %c0_i32_1 = arith.constant 0 : i32
    return %c0_i32, %c0_i32_0 : i32, i32
  }
  func.func @transform_3(%arg0: i32, %arg1: i32) -> (i32, i32) {
    %c0_i32 = arith.constant 0 : i32
    %c0_i32_0 = arith.constant 0 : i32
    %c0_i32_1 = arith.constant 0 : i32
    return %c0_i32, %c0_i32_0 : i32, i32
  }
  func.func @transform_4(%arg0: i32, %arg1: i32) -> (i32, i32) {
    %c0_i32 = arith.constant 0 : i32
    %c0_i32_0 = arith.constant 0 : i32
    %c0_i32_1 = arith.constant 0 : i32
    return %c0_i32, %c0_i32_0 : i32, i32
  }
  func.func @transform_5(%arg0: i32, %arg1: i32) -> (i32, i32) {
    %c0_i32 = arith.constant 0 : i32
    %c0_i32_0 = arith.constant 0 : i32
    %c0_i32_1 = arith.constant 0 : i32
    return %c0_i32, %c0_i32_0 : i32, i32
  }
  func.func @transform_6(%arg0: i32, %arg1: i32) -> (i32, i32) {
    %c0_i32 = arith.constant 0 : i32
    %c0_i32_0 = arith.constant 0 : i32
    %c0_i32_1 = arith.constant 0 : i32
    return %c0_i32, %c0_i32_0 : i32, i32
  }
  func.func @transform_7(%arg0: i32, %arg1: i32) -> (i32, i32, i32) {
    %c0_i32 = arith.constant 0 : i32
    %c0_i32_0 = arith.constant 0 : i32
    %c0_i32_1 = arith.constant 0 : i32
    return %arg0, %c0_i32, %c0_i32_0 : i32, i32, i32
  }
  func.func @transform_8(%arg0: i32, %arg1: i32) -> (i32, i32, i32) {
    %c0_i32 = arith.constant 0 : i32
    %c0_i32_0 = arith.constant 0 : i32
    %c0_i32_1 = arith.constant 0 : i32
    return %arg0, %c0_i32, %c0_i32_0 : i32, i32, i32
  }
}

</mosaic_0001>

<llo_original>
// kernel: tpu_custom_call.1
$region0: #{tpu_custom_call.1}
  #allocation0 [shape = 'u32[]', space=smem, size = 0x4, offset = 0x4, fixed_abs, tag = 'smem constant byte address 0x4 - core index']
  #allocation1 [shape = 'u32[72,128]{1,0:T(1,128)}', space=vmem, size = 0x9000, scoped, tag = 'internal scratch']
  #allocation2 [shape = 'f32[16,16]{1,0:T(8,128)}', space=vmem, size = 0x2000, scoped, tag = 'scratch operand']
  #allocation3 [shape = 'f32[16,16]{1,0:T(8,128)}', space=vmem, size = 0x2000, scoped, tag = 'scratch operand']
  %s0 = inlined_call_operand.hbm [shape: f32[2,16,16,16], index: 0, kind: input, shape index: {}]
  %s1 = inlined_call_operand.vmem [shape: f32[16,8], index: 1, kind: input, shape index: {}]
  %s2 = inlined_call_operand.vmem [shape: f32[1,8], index: 2, kind: input, shape index: {}]
  %s3 = inlined_call_operand.vmem [shape: f32[8,16], index: 3, kind: input, shape index: {}]
  %s4 = inlined_call_operand.vmem [shape: f32[1,16], index: 4, kind: input, shape index: {}]
  %s5 = inlined_call_operand.vmem [shape: f32[8,16], index: 5, kind: input, shape index: {}]
  %s6 = inlined_call_operand.vmem [shape: f32[1,16], index: 6, kind: input, shape index: {}]
  %s7 = inlined_call_operand.hbm [shape: f32[2,16,16], index: 7, kind: output, shape index: {0}]
  %s8 = inlined_call_operand.hbm [shape: f32[2,16,16], index: 8, kind: output, shape index: {1}]
  %9 = xla_tuple %s7, %s8
  %s10 = sld [smem:[#allocation0]]
  $region81: #{tpu_custom_call.1} parent=0
    _
  %s12 = ssub.s32 1, %s10
  %s13 = scalar_select 0, %s12, %s10
  $region1: #{tpu_custom_call.1} parent=0
    #allocation4 [shape = 'u8[262144]{0}', space=vmem, size = 0x40000, scoped, tag = 'input window, operand 0']
    #allocation5 [shape = 's32[2]{0}', space=sflag, size = 0x8, scoped, tag = 'scoped memory for tpu_custom_call.1']
    #allocation6 [shape = 's32[2]{0}', space=sflag, size = 0x8, scoped, tag = 'scoped memory for tpu_custom_call.1']
    #allocation7 [shape = 'u8[16384]{0}', space=vmem, size = 0x4000, scoped, tag = 'output window, operand 0']
    #allocation8 [shape = 'u8[16384]{0}', space=vmem, size = 0x4000, scoped, tag = 'output window, operand 1']
    #allocation9 [shape = 's32[2]{0}', space=sflag, size = 0x8, scoped, tag = 'scoped memory for tpu_custom_call.1']
    %14 = vsyncpa [#allocation5], 0
    %s15 = scalar_lea.sflag [#allocation5], 1
    %16 = vsyncpa %s15, 0
    %17 = vsyncpa [#allocation6], 0
    %s18 = scalar_lea.sflag [#allocation6], 1
    %19 = vsyncpa %s18, 0
    %20 = vsyncpa [#allocation9], 0
    %s21 = scalar_lea.sflag [#allocation9], 1
    %22 = vsyncpa %s21, 0
    loop: start=0, step=1, limit=4
    $region2: #{tpu_custom_call.1} parent=1 // loop_pre_header
      _
    $region3: #{tpu_custom_call.1} parent=1 // loop_header
      %s24 = sphi 0, %s28
      %p25 = scmp.ge.s32.totalorder %s24, 4
      %s31 = sphi 0, %s43
      %s32 = sphi 0, %s39
      %s33 = sphi 0, %s31
      %s34 = sphi 0, %s32
      %s35 = sphi 0, %s33
      %s36 = sphi 0, %s34
      %s48 = sphi 0, %s50
      %s51 = sphi 0, %s48
      %s52 = sphi 0, %s51
      %s68 = sphi 0, %s52
      %s72 = sphi 0, %s72
      %s74 = sphi 0, %s72
      %s75 = sphi 0, %s74
      %s89 = sphi 0, %s75
      %s93 = sphi 0, %s93
      %s95 = sphi 0, %s93
      %s96 = sphi 0, %s95
      %s110 = sphi 0, %s96
      %s114 = sphi 0, %s114
      %s116 = sphi 0, %s114
      %s117 = sphi 0, %s116
      %s131 = sphi 0, %s117
      %s135 = sphi 0, %s135
      %s137 = sphi 0, %s135
      %s138 = sphi 0, %s137
      %s152 = sphi 0, %s138
      %s156 = sphi 0, %s156
      %s158 = sphi 0, %s156
      %s159 = sphi 0, %s158
      %s173 = sphi 0, %s159
      %s177 = sphi 0, %s177
      %s179 = sphi 0, %s177
      %s180 = sphi 0, %s179
      %s194 = sphi 0, %s180
      %s200 = sphi 0, %s202
      %s203 = sphi 0, %s200
      %s204 = sphi 0, %s203
      %s220 = sphi 0, %s204
      %s226 = sphi 0, %s228
      %s229 = sphi 0, %s226
      %s230 = sphi 0, %s229
      %s246 = sphi 0, %s230
    $region4: #{tpu_custom_call.1} parent=1 // loop_header_branch
      %27 = sbr.rel (%p25) target = $region8
    $region5: #{tpu_custom_call.1} parent=1 // loop_body
      %s29 = ssub.s32 %s24, 1
      %s30 = ssub.s32 %s24, 2
      %s37 = sadd.s32 1, %s32
      %p38 = scmp.ge.s32.totalorder %s37, 1
      %s39 = scalar_select %p38, 0, %s37
      %s40 = sadd.s32 1, %s31
      %s41 = scalar_select %p38, %s40, %s31
      %p42 = scmp.ge.s32.totalorder %s41, 2
      %s43 = scalar_select %p42, 0, %s41
      %s44 = ssub.s32 %s31, %s43
      %s45 = ssub.s32 %s32, %s39
      %s46 = sor.u32 %s44, %s45
      %p47 = scmp.eq.s32.totalorder %s46, 0
      %s49 = sadd.s32 %s48, 1
      %s50 = scalar_select %p47, %s48, %s49
      %p53 = pneg %p47
      %p54 = scmp.eq.s32.totalorder %s24, 1
      %p55 = por %p53, %p54
      %p56 = scmp.ne.s32.totalorder %s48, %s51
      %p57 = scmp.eq.s32.totalorder %s24, 0
      %p58 = por %p56, %p57
      %p59 = scmp.ne.s32.totalorder %s48, %s51
      %p60 = scmp.eq.s32.totalorder %s29, 1
      %p61 = por %p59, %p60
      %p62 = scmp.ne.s32.totalorder %s51, %s52
      %p63 = scmp.eq.s32.totalorder %s29, 0
      %p64 = por %p62, %p63
      %p65 = scmp.ne.s32.totalorder %s51, %s52
      %p66 = scmp.eq.s32.totalorder %s30, 1
      %p67 = por %p65, %p66
      %p69 = scmp.ne.s32.totalorder %s52, %s68
      %p70 = scmp.eq.s32.totalorder %s30, 0
      %p71 = por %p69, %p70
      %s73 = sadd.s32 %s72, 1
      %p76 = scmp.eq.s32.totalorder %s24, 1
      %p77 = scmp.ne.s32.totalorder %s72, %s74
      %p78 = scmp.eq.s32.totalorder %s24, 0
      %p79 = por %p77, %p78
      %p80 = scmp.ne.s32.totalorder %s72, %s74
      %p81 = scmp.eq.s32.totalorder %s29, 1
      %p82 = por %p80, %p81
      %p83 = scmp.ne.s32.totalorder %s74, %s75
      %p84 = scmp.eq.s32.totalorder %s29, 0
      %p85 = por %p83, %p84
      %p86 = scmp.ne.s32.totalorder %s74, %s75
      %p87 = scmp.eq.s32.totalorder %s30, 1
      %p88 = por %p86, %p87
      %p90 = scmp.ne.s32.totalorder %s75, %s89
      %p91 = scmp.eq.s32.totalorder %s30, 0
      %p92 = por %p90, %p91
      %s94 = sadd.s32 %s93, 1
      %p97 = scmp.eq.s32.totalorder %s24, 1
      %p98 = scmp.ne.s32.totalorder %s93, %s95
      %p99 = scmp.eq.s32.totalorder %s24, 0
      %p100 = por %p98, %p99
      %p101 = scmp.ne.s32.totalorder %s93, %s95
      %p102 = scmp.eq.s32.totalorder %s29, 1
      %p103 = por %p101, %p102
      %p104 = scmp.ne.s32.totalorder %s95, %s96
      %p105 = scmp.eq.s32.totalorder %s29, 0
      %p106 = por %p104, %p105
      %p107 = scmp.ne.s32.totalorder %s95, %s96
      %p108 = scmp.eq.s32.totalorder %s30, 1
      %p109 = por %p107, %p108
      %p111 = scmp.ne.s32.totalorder %s96, %s110
      %p112 = scmp.eq.s32.totalorder %s30, 0
      %p113 = por %p111, %p112
      %s115 = sadd.s32 %s114, 1
      %p118 = scmp.eq.s32.totalorder %s24, 1
      %p119 = scmp.ne.s32.totalorder %s114, %s116
      %p120 = scmp.eq.s32.totalorder %s24, 0
      %p121 = por %p119, %p120
      %p122 = scmp.ne.s32.totalorder %s114, %s116
      %p123 = scmp.eq.s32.totalorder %s29, 1
      %p124 = por %p122, %p123
      %p125 = scmp.ne.s32.totalorder %s116, %s117
      %p126 = scmp.eq.s32.totalorder %s29, 0
      %p127 = por %p125, %p126
      %p128 = scmp.ne.s32.totalorder %s116, %s117
      %p129 = scmp.eq.s32.totalorder %s30, 1
      %p130 = por %p128, %p129
      %p132 = scmp.ne.s32.totalorder %s117, %s131
      %p133 = scmp.eq.s32.totalorder %s30, 0
      %p134 = por %p132, %p133
      %s136 = sadd.s32 %s135, 1
      %p139 = scmp.eq.s32.totalorder %s24, 1
      %p140 = scmp.ne.s32.totalorder %s135, %s137
      %p141 = scmp.eq.s32.totalorder %s24, 0
      %p142 = por %p140, %p141
      %p143 = scmp.ne.s32.totalorder %s135, %s137
      %p144 = scmp.eq.s32.totalorder %s29, 1
      %p145 = por %p143, %p144
      %p146 = scmp.ne.s32.totalorder %s137, %s138
      %p147 = scmp.eq.s32.totalorder %s29, 0
      %p148 = por %p146, %p147
      %p149 = scmp.ne.s32.totalorder %s137, %s138
      %p150 = scmp.eq.s32.totalorder %s30, 1
      %p151 = por %p149, %p150
      %p153 = scmp.ne.s32.totalorder %s138, %s152
      %p154 = scmp.eq.s32.totalorder %s30, 0
      %p155 = por %p153, %p154
      %s157 = sadd.s32 %s156, 1
      %p160 = scmp.eq.s32.totalorder %s24, 1
      %p161 = scmp.ne.s32.totalorder %s156, %s158
      %p162 = scmp.eq.s32.totalorder %s24, 0
      %p163 = por %p161, %p162
      %p164 = scmp.ne.s32.totalorder %s156, %s158
      %p165 = scmp.eq.s32.totalorder %s29, 1
      %p166 = por %p164, %p165
      %p167 = scmp.ne.s32.totalorder %s158, %s159
      %p168 = scmp.eq.s32.totalorder %s29, 0
      %p169 = por %p167, %p168
      %p170 = scmp.ne.s32.totalorder %s158, %s159
      %p171 = scmp.eq.s32.totalorder %s30, 1
      %p172 = por %p170, %p171
      %p174 = scmp.ne.s32.totalorder %s159, %s173
      %p175 = scmp.eq.s32.totalorder %s30, 0
      %p176 = por %p174, %p175
      %s178 = sadd.s32 %s177, 1
      %p181 = scmp.eq.s32.totalorder %s24, 1
      %p182 = scmp.ne.s32.totalorder %s177, %s179
      %p183 = scmp.eq.s32.totalorder %s24, 0
      %p184 = por %p182, %p183
      %p185 = scmp.ne.s32.totalorder %s177, %s179
      %p186 = scmp.eq.s32.totalorder %s29, 1
      %p187 = por %p185, %p186
      %p188 = scmp.ne.s32.totalorder %s179, %s180
      %p189 = scmp.eq.s32.totalorder %s29, 0
      %p190 = por %p188, %p189
      %p191 = scmp.ne.s32.totalorder %s179, %s180
      %p192 = scmp.eq.s32.totalorder %s30, 1
      %p193 = por %p191, %p192
      %p195 = scmp.ne.s32.totalorder %s180, %s194
      %p196 = scmp.eq.s32.totalorder %s30, 0
      %p197 = por %p195, %p196
      %s198 = ssub.s32 %s31, %s43
      %p199 = scmp.eq.s32.totalorder %s198, 0
      %s201 = sadd.s32 %s200, 1
      %s202 = scalar_select %p199, %s200, %s201
      %p205 = pneg %p199
      %p206 = scmp.eq.s32.totalorder %s24, 1
      %p207 = por %p205, %p206
      %p208 = scmp.ne.s32.totalorder %s200, %s203
      %p209 = scmp.eq.s32.totalorder %s24, 0
      %p210 = por %p208, %p209
      %p211 = scmp.ne.s32.totalorder %s200, %s203
      %p212 = scmp.eq.s32.totalorder %s29, 1
      %p213 = por %p211, %p212
      %p214 = scmp.ne.s32.totalorder %s203, %s204
      %p215 = scmp.eq.s32.totalorder %s29, 0
      %p216 = por %p214, %p215
      %p217 = scmp.ne.s32.totalorder %s203, %s204
      %p218 = scmp.eq.s32.totalorder %s30, 1
      %p219 = por %p217, %p218
      %p221 = scmp.ne.s32.totalorder %s204, %s220
      %p222 = scmp.eq.s32.totalorder %s30, 0
      %p223 = por %p221, %p222
      %s224 = ssub.s32 %s31, %s43
      %p225 = scmp.eq.s32.totalorder %s224, 0
      %s227 = sadd.s32 %s226, 1
      %s228 = scalar_select %p225, %s226, %s227
      %p231 = pneg %p225
      %p232 = scmp.eq.s32.totalorder %s24, 1
      %p233 = por %p231, %p232
      %p234 = scmp.ne.s32.totalorder %s226, %s229
      %p235 = scmp.eq.s32.totalorder %s24, 0
      %p236 = por %p234, %p235
      %p237 = scmp.ne.s32.totalorder %s226, %s229
      %p238 = scmp.eq.s32.totalorder %s29, 1
      %p239 = por %p237, %p238
      %p240 = scmp.ne.s32.totalorder %s229, %s230
      %p241 = scmp.eq.s32.totalorder %s29, 0
      %p242 = por %p240, %p241
      %p243 = scmp.ne.s32.totalorder %s229, %s230
      %p244 = scmp.eq.s32.totalorder %s30, 1
      %p245 = por %p243, %p244
      %p247 = scmp.ne.s32.totalorder %s230, %s246
      %p248 = scmp.eq.s32.totalorder %s30, 0
      %p249 = por %p247, %p248
      %p250 = scmp.le.s32.totalorder 1, %s24
      %p251 = scmp.lt.s32.totalorder %s24, 3
      %p252 = pnand %p250, %p251
      %p253 = pneg %p252
      // Predicated region
      $region9: #{tpu_custom_call.1} parent=5 // pred_check
        _
      $region10: #{tpu_custom_call.1} parent=5 // pred_check_branch
        %255 = sbr.rel (%p252) target = $region12
      $region11: #{tpu_custom_call.1} parent=5 // pred_region
        %s256 = ssub.s32 %s24, 1
        // Predicated region
        $region13: #{tpu_custom_call.1} parent=11 // pred_check
          %p257 = pneg %p85
        $region14: #{tpu_custom_call.1} parent=11 // pred_check_branch
          %259 = sbr.rel (%p257) target = $region16
        $region15: #{tpu_custom_call.1} parent=11 // pred_region
          _
        $region16: #{tpu_custom_call.1} parent=11 // pred_fallthru
          _
        // Predicated region
        $region17: #{tpu_custom_call.1} parent=11 // pred_check
          %p260 = pneg %p106
        $region18: #{tpu_custom_call.1} parent=11 // pred_check_branch
          %262 = sbr.rel (%p260) target = $region20
        $region19: #{tpu_custom_call.1} parent=11 // pred_region
          _
        $region20: #{tpu_custom_call.1} parent=11 // pred_fallthru
          _
        // Predicated region
        $region21: #{tpu_custom_call.1} parent=11 // pred_check
          %p263 = pneg %p127
        $region22: #{tpu_custom_call.1} parent=11 // pred_check_branch
          %265 = sbr.rel (%p263) target = $region24
        $region23: #{tpu_custom_call.1} parent=11 // pred_region
          _
        $region24: #{tpu_custom_call.1} parent=11 // pred_fallthru
          _
        // Predicated region
        $region25: #{tpu_custom_call.1} parent=11 // pred_check
          %p266 = pneg %p148
        $region26: #{tpu_custom_call.1} parent=11 // pred_check_branch
          %268 = sbr.rel (%p266) target = $region28
        $region27: #{tpu_custom_call.1} parent=11 // pred_region
          _
        $region28: #{tpu_custom_call.1} parent=11 // pred_fallthru
          _
        // Predicated region
        $region29: #{tpu_custom_call.1} parent=11 // pred_check
          %p269 = pneg %p169
        $region30: #{tpu_custom_call.1} parent=11 // pred_check_branch
          %271 = sbr.rel (%p269) target = $region32
        $region31: #{tpu_custom_call.1} parent=11 // pred_region
          _
        $region32: #{tpu_custom_call.1} parent=11 // pred_fallthru
          _
        // Predicated region
        $region33: #{tpu_custom_call.1} parent=11 // pred_check
          %p272 = pneg %p190
        $region34: #{tpu_custom_call.1} parent=11 // pred_check_branch
          %274 = sbr.rel (%p272) target = $region36
        $region35: #{tpu_custom_call.1} parent=11 // pred_region
          _
        $region36: #{tpu_custom_call.1} parent=11 // pred_fallthru
          _
      $region12: #{tpu_custom_call.1} parent=5 // pred_fallthru
        _
      %p275 = scmp.lt.s32.totalorder %s24, 2
      // Predicated region
      $region37: #{tpu_custom_call.1} parent=5 // pred_check
        %p276 = pneg %p275
      $region38: #{tpu_custom_call.1} parent=5 // pred_check_branch
        %278 = sbr.rel (%p276) target = $region40
      $region39: #{tpu_custom_call.1} parent=5 // pred_region
        // Predicated region
        $region41: #{tpu_custom_call.1} parent=39 // pred_check
          %p279 = pneg %p58
        $region42: #{tpu_custom_call.1} parent=39 // pred_check_branch
          %281 = sbr.rel (%p279) target = $region44
        $region43: #{tpu_custom_call.1} parent=39 // pred_region
          %s282 = sand.u32 %s48, 1
          %s283 = scalar_lea.sflag [#allocation5], %s282
          %s284 = sand.u32 %s48, 1
          %s285 = smul.addr %s284, 256
          %s286 = scalar_lea.vmem [#allocation4], %s285
          %s287 = smul.u32 2, %s32
          %289 = vsyncadd %s283, 0
          %s290 = smul.addr %s31, 32
          %s291 = sadd.s32 %s287, %s290
          %s292 = smul.addr %s291, 8
          %s293 = scalar_lea.hbm %s0, %s292
          %s294 = sshll.u32 %s293, 4
          %s295 = int_to_ptr.hbm [resolvable:$true] %s294
          %s296 = sshll.u32 %s286, 4
          %s297 = int_to_ptr.vmem [resolvable:$true] %s296
          %302 = dma.hbm_to_vmem [thread:$0]  %s295, 4096, %s297, %s283, 128, 128, 8
        $region44: #{tpu_custom_call.1} parent=39 // pred_fallthru
          _
      $region40: #{tpu_custom_call.1} parent=5 // pred_fallthru
        _
      %p303 = scmp.le.s32.totalorder 1, %s24
      %p304 = scmp.lt.s32.totalorder %s24, 3
      %p305 = pnand %p303, %p304
      %p306 = pneg %p305
      // Predicated region
      $region45: #{tpu_custom_call.1} parent=5 // pred_check
        _
      $region46: #{tpu_custom_call.1} parent=5 // pred_check_branch
        %308 = sbr.rel (%p305) target = $region48
      $region47: #{tpu_custom_call.1} parent=5 // pred_region
        %s309 = ssub.s32 %s24, 1
        %s310 = sand.u32 %s51, 1
        %s311 = scalar_lea.sflag [#allocation5], %s310
        %s312 = sand.u32 %s51, 1
        %s313 = smul.addr %s312, 256
        %s314 = scalar_lea.vmem [#allocation4], %s313
        // Predicated region
        $region49: #{tpu_custom_call.1} parent=47 // pred_check
          %p315 = pneg %p64
        $region50: #{tpu_custom_call.1} parent=47 // pred_check_branch
          %317 = sbr.rel (%p315) target = $region52
        $region51: #{tpu_custom_call.1} parent=47 // pred_region
          %319 = dma.done %s311, 4096
        $region52: #{tpu_custom_call.1} parent=47 // pred_fallthru
          _
        %s320 = sand.u32 %s51, 1
        %s321 = scalar_lea.sflag [#allocation5], %s320
        %s322 = sand.u32 %s51, 1
        %s323 = smul.addr %s322, 256
        %s324 = scalar_lea.vmem [#allocation4], %s323
        %p325 = pneg %p64
        %p326 = pneg %p61
        %p327 = pneg %p85
        %p328 = pneg %p82
        %p329 = pneg %p106
        %p330 = pneg %p103
        %p331 = pneg %p127
        %p332 = pneg %p124
        %p333 = pneg %p148
        %p334 = pneg %p145
        %p335 = pneg %p169
        %p336 = pneg %p166
        %p337 = pneg %p190
        %p338 = pneg %p187
        %p339 = pneg %p216
        %p340 = pneg %p213
        %s341 = sand.u32 %s203, 1
        %s342 = scalar_lea.sflag [#allocation6], %s341
        %s343 = sand.u32 %s203, 1
        %s344 = smul.addr %s343, 16
        %s345 = scalar_lea.vmem [#allocation7], %s344
        %p346 = pneg %p242
        %p347 = pneg %p239
        %s348 = sand.u32 %s229, 1
        %s349 = scalar_lea.sflag [#allocation9], %s348
        %s350 = sand.u32 %s229, 1
        %s351 = smul.addr %s350, 16
        %s352 = scalar_lea.vmem [#allocation8], %s351
        %s353 = smul.u32 2, %s34
        %v354 = vld [vmem:[%s314] sm:$0xff]
        %v355 = vld [vmem:[%s314 + $0x8] sm:$0xff]
        %v356 = vld [vmem:[%s314 + $0x10] sm:$0xff]
        %v357 = vld [vmem:[%s314 + $0x18] sm:$0xff]
        %v358 = vld [vmem:[%s314 + $0x20] sm:$0xff]
        %v359 = vld [vmem:[%s314 + $0x28] sm:$0xff]
        %v360 = vld [vmem:[%s314 + $0x30] sm:$0xff]
        %v361 = vld [vmem:[%s314 + $0x38] sm:$0xff]
        %v362 = vld [vmem:[%s314 + $0x40] sm:$0xff]
        %v363 = vld [vmem:[%s314 + $0x48] sm:$0xff]
        %v364 = vld [vmem:[%s314 + $0x50] sm:$0xff]
        %v365 = vld [vmem:[%s314 + $0x58] sm:$0xff]
        %v366 = vld [vmem:[%s314 + $0x60] sm:$0xff]
        %v367 = vld [vmem:[%s314 + $0x68] sm:$0xff]
        %v368 = vld [vmem:[%s314 + $0x70] sm:$0xff]
        %v369 = vld [vmem:[%s314 + $0x78] sm:$0xff]
        %v370 = vld [vmem:[%s314 + $0x80] sm:$0xff]
        %v371 = vld [vmem:[%s314 + $0x88] sm:$0xff]
        %v372 = vld [vmem:[%s314 + $0x90] sm:$0xff]
        %v373 = vld [vmem:[%s314 + $0x98] sm:$0xff]
        %v374 = vld [vmem:[%s314 + $0xa0] sm:$0xff]
        %v375 = vld [vmem:[%s314 + $0xa8] sm:$0xff]
        %v376 = vld [vmem:[%s314 + $0xb0] sm:$0xff]
        %v377 = vld [vmem:[%s314 + $0xb8] sm:$0xff]
        %v378 = vld [vmem:[%s314 + $0xc0] sm:$0xff]
        %v379 = vld [vmem:[%s314 + $0xc8] sm:$0xff]
        %v380 = vld [vmem:[%s314 + $0xd0] sm:$0xff]
        %v381 = vld [vmem:[%s314 + $0xd8] sm:$0xff]
        %v382 = vld [vmem:[%s314 + $0xe0] sm:$0xff]
        %v383 = vld [vmem:[%s314 + $0xe8] sm:$0xff]
        %v384 = vld [vmem:[%s314 + $0xf0] sm:$0xff]
        %v385 = vld [vmem:[%s314 + $0xf8] sm:$0xff]
        %p386 = scmp.eq.s32.totalorder %s34, 0
        // Predicated region
        $region53: #{tpu_custom_call.1} parent=47 // pred_check
          %p387 = pneg %p386
        $region54: #{tpu_custom_call.1} parent=47 // pred_check_branch
          %389 = sbr.rel (%p387) target = $region56
        $region55: #{tpu_custom_call.1} parent=47 // pred_region
          %vm390 = vcmask 130048
          %391 = vst.msk [vmem:[#allocation3] sm:$0xff] %vm390, 0.0
          %392 = vst.msk [vmem:[#allocation3 + $0x8] sm:$0xff] %vm390, 0.0
        $region56: #{tpu_custom_call.1} parent=47 // pred_fallthru
          _
        %vm393 = vcmask 130048
        %v394 = vsel %vm393, %v354, 0.0
        %395 = vadd.xlane.f32.xlu0 %v394
        %v396 = vpop.xlane.xlu0 %395
        %v397 = vsel %vm393, %v355, 0.0
        %398 = vadd.xlane.f32.xlu0 %v397
        %v399 = vpop.xlane.xlu0 %398
        %v400 = vsel %vm393, %v356, 0.0
        %401 = vadd.xlane.f32.xlu0 %v400
        %v402 = vpop.xlane.xlu0 %401
        %v403 = vsel %vm393, %v357, 0.0
        %404 = vadd.xlane.f32.xlu0 %v403
        %v405 = vpop.xlane.xlu0 %404
        %v406 = vsel %vm393, %v358, 0.0
        %407 = vadd.xlane.f32.xlu0 %v406
        %v408 = vpop.xlane.xlu0 %407
        %v409 = vsel %vm393, %v359, 0.0
        %410 = vadd.xlane.f32.xlu0 %v409
        %v411 = vpop.xlane.xlu0 %410
        %v412 = vsel %vm393, %v360, 0.0
        %413 = vadd.xlane.f32.xlu0 %v412
        %v414 = vpop.xlane.xlu0 %413
        %v415 = vsel %vm393, %v361, 0.0
        %416 = vadd.xlane.f32.xlu0 %v415
        %v417 = vpop.xlane.xlu0 %416
        %v418 = vsel %vm393, %v362, 0.0
        %419 = vadd.xlane.f32.xlu0 %v418
        %v420 = vpop.xlane.xlu0 %419
        %v421 = vsel %vm393, %v363, 0.0
        %422 = vadd.xlane.f32.xlu0 %v421
        %v423 = vpop.xlane.xlu0 %422
        %v424 = vsel %vm393, %v364, 0.0
        %425 = vadd.xlane.f32.xlu0 %v424
        %v426 = vpop.xlane.xlu0 %425
        %v427 = vsel %vm393, %v365, 0.0
        %428 = vadd.xlane.f32.xlu0 %v427
        %v429 = vpop.xlane.xlu0 %428
        %v430 = vsel %vm393, %v366, 0.0
        %431 = vadd.xlane.f32.xlu0 %v430
        %v432 = vpop.xlane.xlu0 %431
        %v433 = vsel %vm393, %v367, 0.0
        %434 = vadd.xlane.f32.xlu0 %v433
        %v435 = vpop.xlane.xlu0 %434
        %v436 = vsel %vm393, %v368, 0.0
        %437 = vadd.xlane.f32.xlu0 %v436
        %v438 = vpop.xlane.xlu0 %437
        %v439 = vsel %vm393, %v369, 0.0
        %440 = vadd.xlane.f32.xlu0 %v439
        %v441 = vpop.xlane.xlu0 %440
        %v442 = vsel %vm393, %v370, 0.0
        %443 = vadd.xlane.f32.xlu0 %v442
        %v444 = vpop.xlane.xlu0 %443
        %v445 = vsel %vm393, %v371, 0.0
        %446 = vadd.xlane.f32.xlu0 %v445
        %v447 = vpop.xlane.xlu0 %446
        %v448 = vsel %vm393, %v372, 0.0
        %449 = vadd.xlane.f32.xlu0 %v448
        %v450 = vpop.xlane.xlu0 %449
        %v451 = vsel %vm393, %v373, 0.0
        %452 = vadd.xlane.f32.xlu0 %v451
        %v453 = vpop.xlane.xlu0 %452
        %v454 = vsel %vm393, %v374, 0.0
        %455 = vadd.xlane.f32.xlu0 %v454
        %v456 = vpop.xlane.xlu0 %455
        %v457 = vsel %vm393, %v375, 0.0
        %458 = vadd.xlane.f32.xlu0 %v457
        %v459 = vpop.xlane.xlu0 %458
        %v460 = vsel %vm393, %v376, 0.0
        %461 = vadd.xlane.f32.xlu0 %v460
        %v462 = vpop.xlane.xlu0 %461
        %v463 = vsel %vm393, %v377, 0.0
        %464 = vadd.xlane.f32.xlu0 %v463
        %v465 = vpop.xlane.xlu0 %464
        %v466 = vsel %vm393, %v378, 0.0
        %467 = vadd.xlane.f32.xlu0 %v466
        %v468 = vpop.xlane.xlu0 %467
        %v469 = vsel %vm393, %v379, 0.0
        %470 = vadd.xlane.f32.xlu0 %v469
        %v471 = vpop.xlane.xlu0 %470
        %v472 = vsel %vm393, %v380, 0.0
        %473 = vadd.xlane.f32.xlu0 %v472
        %v474 = vpop.xlane.xlu0 %473
        %v475 = vsel %vm393, %v381, 0.0
        %476 = vadd.xlane.f32.xlu0 %v475
        %v477 = vpop.xlane.xlu0 %476
        %v478 = vsel %vm393, %v382, 0.0
        %479 = vadd.xlane.f32.xlu0 %v478
        %v480 = vpop.xlane.xlu0 %479
        %v481 = vsel %vm393, %v383, 0.0
        %482 = vadd.xlane.f32.xlu0 %v481
        %v483 = vpop.xlane.xlu0 %482
        %v484 = vsel %vm393, %v384, 0.0
        %485 = vadd.xlane.f32.xlu0 %v484
        %v486 = vpop.xlane.xlu0 %485
        %v487 = vsel %vm393, %v385, 0.0
        %488 = vadd.xlane.f32.xlu0 %v487
        %v489 = vpop.xlane.xlu0 %488
        %v490 = vmul.f32 %v396, 0.0625
        %v491 = vmul.f32 %v399, 0.0625
        %v492 = vmul.f32 %v402, 0.0625
        %v493 = vmul.f32 %v405, 0.0625
        %v494 = vmul.f32 %v408, 0.0625
        %v495 = vmul.f32 %v411, 0.0625
        %v496 = vmul.f32 %v414, 0.0625
        %v497 = vmul.f32 %v417, 0.0625
        %v498 = vmul.f32 %v420, 0.0625
        %v499 = vmul.f32 %v423, 0.0625
        %v500 = vmul.f32 %v426, 0.0625
        %v501 = vmul.f32 %v429, 0.0625
        %v502 = vmul.f32 %v432, 0.0625
        %v503 = vmul.f32 %v435, 0.0625
        %v504 = vmul.f32 %v438, 0.0625
        %v505 = vmul.f32 %v441, 0.0625
        %v506 = vmul.f32 %v444, 0.0625
        %v507 = vmul.f32 %v447, 0.0625
        %v508 = vmul.f32 %v450, 0.0625
        %v509 = vmul.f32 %v453, 0.0625
        %v510 = vmul.f32 %v456, 0.0625
        %v511 = vmul.f32 %v459, 0.0625
        %v512 = vmul.f32 %v462, 0.0625
        %v513 = vmul.f32 %v465, 0.0625
        %v514 = vmul.f32 %v468, 0.0625
        %v515 = vmul.f32 %v471, 0.0625
        %v516 = vmul.f32 %v474, 0.0625
        %v517 = vmul.f32 %v477, 0.0625
        %v518 = vmul.f32 %v480, 0.0625
        %v519 = vmul.f32 %v483, 0.0625
        %v520 = vmul.f32 %v486, 0.0625
        %v521 = vmul.f32 %v489, 0.0625
        %v554 = vlaneseq
        %v555 = vand.u32 %v554, 127
        %v556 = vperm.slane %v490, %v555
        %v557 = vadd.s32 %v555, 4294967288
        %v558 = vperm.slane %v491, %v557
        %vm559 = vcmask 130112
        %v560 = vsel %vm559, %v558, %v556
        %v561 = vperm.slane %v492, %v555
        %v562 = vperm.slane %v493, %v557
        %v563 = vsel %vm559, %v562, %v561
        %v564 = vperm.slane %v494, %v555
        %v565 = vperm.slane %v495, %v557
        %v566 = vsel %vm559, %v565, %v564
        %v567 = vperm.slane %v496, %v555
        %v568 = vperm.slane %v497, %v557
        %v569 = vsel %vm559, %v568, %v567
        %v570 = vperm.slane %v498, %v555
        %v571 = vperm.slane %v499, %v557
        %v572 = vsel %vm559, %v571, %v570
        %v573 = vperm.slane %v500, %v555
        %v574 = vperm.slane %v501, %v557
        %v575 = vsel %vm559, %v574, %v573
        %v576 = vperm.slane %v502, %v555
        %v577 = vperm.slane %v503, %v557
        %v578 = vsel %vm559, %v577, %v576
        %v579 = vperm.slane %v504, %v555
        %v580 = vperm.slane %v505, %v557
        %v581 = vsel %vm559, %v580, %v579
        %v582 = vperm.slane %v506, %v555
        %v583 = vperm.slane %v507, %v557
        %v584 = vsel %vm559, %v583, %v582
        %v585 = vperm.slane %v508, %v555
        %v586 = vperm.slane %v509, %v557
        %v587 = vsel %vm559, %v586, %v585
        %v588 = vperm.slane %v510, %v555
        %v589 = vperm.slane %v511, %v557
        %v590 = vsel %vm559, %v589, %v588
        %v591 = vperm.slane %v512, %v555
        %v592 = vperm.slane %v513, %v557
        %v593 = vsel %vm559, %v592, %v591
        %v594 = vperm.slane %v514, %v555
        %v595 = vperm.slane %v515, %v557
        %v596 = vsel %vm559, %v595, %v594
        %v597 = vperm.slane %v516, %v555
        %v598 = vperm.slane %v517, %v557
        %v599 = vsel %vm559, %v598, %v597
        %v600 = vperm.slane %v518, %v555
        %v601 = vperm.slane %v519, %v557
        %v602 = vsel %vm559, %v601, %v600
        %v603 = vperm.slane %v520, %v555
        %v604 = vperm.slane %v521, %v557
        %v605 = vsel %vm559, %v604, %v603
        %vm606 = vcmask 1041409
        %v607 = vsel %vm606, %v563, %v560
        %vm608 = vcmask 1042434
        %v609 = vsel %vm608, %v566, %v607
        %vm610 = vcmask 1043459
        %v611 = vsel %vm610, %v569, %v609
        %vm612 = vcmask 1044484
        %v613 = vsel %vm612, %v572, %v611
        %vm614 = vcmask 1045509
        %v615 = vsel %vm614, %v575, %v613
        %vm616 = vcmask 1046534
        %v617 = vsel %vm616, %v578, %v615
        %vm618 = vcmask 1047559
        %v619 = vsel %vm618, %v581, %v617
        %v620 = vsel %vm606, %v587, %v584
        %v621 = vsel %vm608, %v590, %v620
        %v622 = vsel %vm610, %v593, %v621
        %v623 = vsel %vm612, %v596, %v622
        %v624 = vsel %vm614, %v599, %v623
        %v625 = vsel %vm616, %v602, %v624
        %v626 = vsel %vm618, %v605, %v625
        %629 = vxpose.xlu0.b32.start [1/16] %v619, 128
        %630 = vxpose.xlu0.b32.cont [2/16] %v626, 128
        %631 = vxpose.xlu0.b32.cont [3/16] 0.0, 128
        %632 = vxpose.xlu0.b32.cont [4/16] 0.0, 128
        %633 = vxpose.xlu0.b32.cont [5/16] 0.0, 128
        %634 = vxpose.xlu0.b32.cont [6/16] 0.0, 128
        %635 = vxpose.xlu0.b32.cont [7/16] 0.0, 128
        %636 = vxpose.xlu0.b32.cont [8/16] 0.0, 128
        %637 = vxpose.xlu0.b32.cont [9/16] 0.0, 128
        %638 = vxpose.xlu0.b32.cont [10/16] 0.0, 128
        %639 = vxpose.xlu0.b32.cont [11/16] 0.0, 128
        %640 = vxpose.xlu0.b32.cont [12/16] 0.0, 128
        %641 = vxpose.xlu0.b32.cont [13/16] 0.0, 128
        %642 = vxpose.xlu0.b32.cont [14/16] 0.0, 128
        %643 = vxpose.xlu0.b32.cont [15/16] 0.0, 128
        %644 = vxpose.xlu0.b32.end [16/16] 0.0, 128
        %v645 = vpop.trf.xlu0
        %v646 = vpop.trf.xlu0
        %v647 = vpop.trf.xlu0
        %v648 = vpop.trf.xlu0
        %v649 = vpop.trf.xlu0
        %v650 = vpop.trf.xlu0
        %v651 = vpop.trf.xlu0
        %v652 = vpop.trf.xlu0
        %v653 = vpop.trf.xlu0
        %v654 = vpop.trf.xlu0
        %v655 = vpop.trf.xlu0
        %v656 = vpop.trf.xlu0
        %v657 = vpop.trf.xlu0
        %v658 = vpop.trf.xlu0
        %v659 = vpop.trf.xlu0
        %v660 = vpop.trf.xlu0
        %s661 = smul.u32 %s34, 16
        %s662 = scalar_lea.vmem [#allocation2], %s661
        %663 = vst.msk [vmem:[%s662] sm:$0xff] %vm393, %v645
        %664 = vst.msk [vmem:[%s662 + $0x8] sm:$0xff] %vm393, %v646
        %v665 = vld [vmem:[#allocation3] sm:$0xff]
        %v666 = vld [vmem:[#allocation3 + $0x8] sm:$0xff]
        %v667 = vadd.f32 %v394, %v397
        %v668 = vrot.slane %v667, 4
        %v669 = vadd.f32 %v667, %v668
        %v670 = vrot.slane %v669, 2
        %v671 = vadd.f32 %v669, %v670
        %v672 = vrot.slane %v671, 1
        %v673 = vadd.f32 %v671, %v672
        %v674 = vadd.f32 %v400, %v403
        %v675 = vrot.slane %v674, 4
        %v676 = vadd.f32 %v674, %v675
        %v677 = vrot.slane %v676, 2
        %v678 = vadd.f32 %v676, %v677
        %v679 = vrot.slane %v678, 1
        %v680 = vadd.f32 %v678, %v679
        %v681 = vadd.f32 %v406, %v409
        %v682 = vrot.slane %v681, 4
        %v683 = vadd.f32 %v681, %v682
        %v684 = vrot.slane %v683, 2
        %v685 = vadd.f32 %v683, %v684
        %v686 = vrot.slane %v685, 1
        %v687 = vadd.f32 %v685, %v686
        %v688 = vadd.f32 %v412, %v415
        %v689 = vrot.slane %v688, 4
        %v690 = vadd.f32 %v688, %v689
        %v691 = vrot.slane %v690, 2
        %v692 = vadd.f32 %v690, %v691
        %v693 = vrot.slane %v692, 1
        %v694 = vadd.f32 %v692, %v693
        %v695 = vadd.f32 %v418, %v421
        %v696 = vrot.slane %v695, 4
        %v697 = vadd.f32 %v695, %v696
        %v698 = vrot.slane %v697, 2
        %v699 = vadd.f32 %v697, %v698
        %v700 = vrot.slane %v699, 1
        %v701 = vadd.f32 %v699, %v700
        %v702 = vadd.f32 %v424, %v427
        %v703 = vrot.slane %v702, 4
        %v704 = vadd.f32 %v702, %v703
        %v705 = vrot.slane %v704, 2
        %v706 = vadd.f32 %v704, %v705
        %v707 = vrot.slane %v706, 1
        %v708 = vadd.f32 %v706, %v707
        %v709 = vadd.f32 %v430, %v433
        %v710 = vrot.slane %v709, 4
        %v711 = vadd.f32 %v709, %v710
        %v712 = vrot.slane %v711, 2
        %v713 = vadd.f32 %v711, %v712
        %v714 = vrot.slane %v713, 1
        %v715 = vadd.f32 %v713, %v714
        %v716 = vadd.f32 %v436, %v439
        %v717 = vrot.slane %v716, 4
        %v718 = vadd.f32 %v716, %v717
        %v719 = vrot.slane %v718, 2
        %v720 = vadd.f32 %v718, %v719
        %v721 = vrot.slane %v720, 1
        %v722 = vadd.f32 %v720, %v721
        %v723 = vadd.f32 %v442, %v445
        %v724 = vrot.slane %v723, 4
        %v725 = vadd.f32 %v723, %v724
        %v726 = vrot.slane %v725, 2
        %v727 = vadd.f32 %v725, %v726
        %v728 = vrot.slane %v727, 1
        %v729 = vadd.f32 %v727, %v728
        %v730 = vadd.f32 %v448, %v451
        %v731 = vrot.slane %v730, 4
        %v732 = vadd.f32 %v730, %v731
        %v733 = vrot.slane %v732, 2
        %v734 = vadd.f32 %v732, %v733
        %v735 = vrot.slane %v734, 1
        %v736 = vadd.f32 %v734, %v735
        %v737 = vadd.f32 %v454, %v457
        %v738 = vrot.slane %v737, 4
        %v739 = vadd.f32 %v737, %v738
        %v740 = vrot.slane %v739, 2
        %v741 = vadd.f32 %v739, %v740
        %v742 = vrot.slane %v741, 1
        %v743 = vadd.f32 %v741, %v742
        %v744 = vadd.f32 %v460, %v463
        %v745 = vrot.slane %v744, 4
        %v746 = vadd.f32 %v744, %v745
        %v747 = vrot.slane %v746, 2
        %v748 = vadd.f32 %v746, %v747
        %v749 = vrot.slane %v748, 1
        %v750 = vadd.f32 %v748, %v749
        %v751 = vadd.f32 %v466, %v469
        %v752 = vrot.slane %v751, 4
        %v753 = vadd.f32 %v751, %v752
        %v754 = vrot.slane %v753, 2
        %v755 = vadd.f32 %v753, %v754
        %v756 = vrot.slane %v755, 1
        %v757 = vadd.f32 %v755, %v756
        %v758 = vadd.f32 %v472, %v475
        %v759 = vrot.slane %v758, 4
        %v760 = vadd.f32 %v758, %v759
        %v761 = vrot.slane %v760, 2
        %v762 = vadd.f32 %v760, %v761
        %v763 = vrot.slane %v762, 1
        %v764 = vadd.f32 %v762, %v763
        %v765 = vadd.f32 %v478, %v481
        %v766 = vrot.slane %v765, 4
        %v767 = vadd.f32 %v765, %v766
        %v768 = vrot.slane %v767, 2
        %v769 = vadd.f32 %v767, %v768
        %v770 = vrot.slane %v769, 1
        %v771 = vadd.f32 %v769, %v770
        %v772 = vadd.f32 %v484, %v487
        %v773 = vrot.slane %v772, 4
        %v774 = vadd.f32 %v772, %v773
        %v775 = vrot.slane %v774, 2
        %v776 = vadd.f32 %v774, %v775
        %v777 = vrot.slane %v776, 1
        %v778 = vadd.f32 %v776, %v777
        %v795 = vsel %vm606, %v680, %v673
        %v796 = vsel %vm608, %v687, %v795
        %v797 = vsel %vm610, %v694, %v796
        %v798 = vsel %vm612, %v701, %v797
        %v799 = vsel %vm614, %v708, %v798
        %v800 = vsel %vm616, %v715, %v799
        %v801 = vsel %vm618, %v722, %v800
        %v802 = vsel %vm606, %v736, %v729
        %v803 = vsel %vm608, %v743, %v802
        %v804 = vsel %vm610, %v750, %v803
        %v805 = vsel %vm612, %v757, %v804
        %v806 = vsel %vm614, %v764, %v805
        %v807 = vsel %vm616, %v771, %v806
        %v808 = vsel %vm618, %v778, %v807
        %811 = vxpose.xlu0.b32.start [1/16] %v801, 128
        %812 = vxpose.xlu0.b32.cont [2/16] %v808, 128
        %813 = vxpose.xlu0.b32.cont [3/16] 0.0, 128
        %814 = vxpose.xlu0.b32.cont [4/16] 0.0, 128
        %815 = vxpose.xlu0.b32.cont [5/16] 0.0, 128
        %816 = vxpose.xlu0.b32.cont [6/16] 0.0, 128
        %817 = vxpose.xlu0.b32.cont [7/16] 0.0, 128
        %818 = vxpose.xlu0.b32.cont [8/16] 0.0, 128
        %819 = vxpose.xlu0.b32.cont [9/16] 0.0, 128
        %820 = vxpose.xlu0.b32.cont [10/16] 0.0, 128
        %821 = vxpose.xlu0.b32.cont [11/16] 0.0, 128
        %822 = vxpose.xlu0.b32.cont [12/16] 0.0, 128
        %823 = vxpose.xlu0.b32.cont [13/16] 0.0, 128
        %824 = vxpose.xlu0.b32.cont [14/16] 0.0, 128
        %825 = vxpose.xlu0.b32.cont [15/16] 0.0, 128
        %826 = vxpose.xlu0.b32.end [16/16] 0.0, 128
        %v827 = vpop.trf.xlu0
        %v828 = vpop.trf.xlu0
        %v829 = vpop.trf.xlu0
        %v830 = vpop.trf.xlu0
        %v831 = vpop.trf.xlu0
        %v832 = vpop.trf.xlu0
        %v833 = vpop.trf.xlu0
        %v834 = vpop.trf.xlu0
        %v835 = vpop.trf.xlu0
        %v836 = vpop.trf.xlu0
        %v837 = vpop.trf.xlu0
        %v838 = vpop.trf.xlu0
        %v839 = vpop.trf.xlu0
        %v840 = vpop.trf.xlu0
        %v841 = vpop.trf.xlu0
        %v842 = vpop.trf.xlu0
        %v843 = vmul.f32 %v827, 0.0625
        %v844 = vmul.f32 %v828, 0.0625
        %v845 = vadd.f32 %v665, %v843
        %v846 = vadd.f32 %v666, %v844
        %847 = vst.msk [vmem:[#allocation3] sm:$0xff] %vm393, %v845
        %848 = vst.msk [vmem:[#allocation3 + $0x8] sm:$0xff] %vm393, %v846
        // Predicated region
        $region57: #{tpu_custom_call.1} parent=47 // pred_check
          %p849 = pneg %p386
        $region58: #{tpu_custom_call.1} parent=47 // pred_check_branch
          %851 = sbr.rel (%p849) target = $region60
        $region59: #{tpu_custom_call.1} parent=47 // pred_region
          %v852 = vld [vmem:[#allocation2] sm:$0xff]
          %v853 = vld [vmem:[#allocation2 + $0x8] sm:$0xff]
          %v854 = vld [vmem:[%s1] sm:$0xff]
          %v855 = vld [vmem:[%s1 + $0x8] sm:$0xff]
          %v856 = vld [vmem:[%s2] sm:$0x1]
          %v858 = vperm.slane %v856, 0
          %v861 = vsel %vm393, %v852, 0
          %v864 = vsel %vm393, %v853, 0
          %866 = vmatpush.msra.mxu0 0.0
          %867 = vmatpush.msra.mxu0 0.0
          %868 = vmatpush.msra.mxu0 0.0
          %869 = vmatpush.msra.mxu0 0.0
          %870 = vmatpush.msra.mxu0 0.0
          %871 = vmatpush.msra.mxu0 0.0
          %872 = vmatpush.msra.mxu0 0.0
          %873 = vmatpush.msra.mxu0 0.0
          %874 = vmatpush.msra.mxu0 0.0
          %875 = vmatpush.msra.mxu0 0.0
          %876 = vmatpush.msra.mxu0 0.0
          %877 = vmatpush.msra.mxu0 0.0
          %878 = vmatpush.msra.mxu0 0.0
          %879 = vmatpush.msra.mxu0 0.0
          %880 = vmatpush.msra.mxu0 %v855
          %881 = vmatpush.msra.mxu0 %v854
          %882 = vmatmul.f32.gmra.mxu0 %v861
          %v883 = vpop.f32.mrf.mxu0
          %v884 = vadd.f32 %v858, %v883
          %885 = vmatmul.f32.gmra.mxu0 %v864
          %v886 = vpop.f32.mrf.mxu0
          %v887 = vadd.f32 %v858, %v886
          %888 = vdwg.mxu0
          %v889 = vadd.f32 %v884, 3.0
          %v890 = vadd.f32 %v887, 3.0
          %v891 = vmax.f32 %v889, 0.0
          %v892 = vmax.f32 %v890, 0.0
          %v893 = vmin.f32 %v891, 6.0
          %v894 = vmin.f32 %v892, 6.0
          %v895 = vmul.f32 %v884, %v893
          %v896 = vmul.f32 %v887, %v894
          %v897 = vmul.f32 %v895, 0.16666667
          %v898 = vmul.f32 %v896, 0.16666667
          %v899 = vld [vmem:[#allocation3] sm:$0xff]
          %v900 = vld [vmem:[#allocation3 + $0x8] sm:$0xff]
          %v902 = vsel %vm393, %v899, 0
          %v905 = vsel %vm393, %v900, 0
          %907 = vmatpush.msra.mxu0 0.0
          %908 = vmatpush.msra.mxu0 0.0
          %909 = vmatpush.msra.mxu0 0.0
          %910 = vmatpush.msra.mxu0 0.0
          %911 = vmatpush.msra.mxu0 0.0
          %912 = vmatpush.msra.mxu0 0.0
          %913 = vmatpush.msra.mxu0 0.0
          %914 = vmatpush.msra.mxu0 0.0
          %915 = vmatpush.msra.mxu0 0.0
          %916 = vmatpush.msra.mxu0 0.0
          %917 = vmatpush.msra.mxu0 0.0
          %918 = vmatpush.msra.mxu0 0.0
          %919 = vmatpush.msra.mxu0 0.0
          %920 = vmatpush.msra.mxu0 0.0
          %921 = vmatpush.msra.mxu0 %v855
          %922 = vmatpush.msra.mxu0 %v854
          %923 = vmatmul.f32.gmra.mxu0 %v902
          %v924 = vpop.f32.mrf.mxu0
          %v925 = vadd.f32 %v858, %v924
          %926 = vmatmul.f32.gmra.mxu0 %v905
          %v927 = vpop.f32.mrf.mxu0
          %v928 = vadd.f32 %v858, %v927
          %929 = vdwg.mxu0
          %v930 = vadd.f32 %v925, 3.0
          %v931 = vadd.f32 %v928, 3.0
          %v932 = vmax.f32 %v930, 0.0
          %v933 = vmax.f32 %v931, 0.0
          %v934 = vmin.f32 %v932, 6.0
          %v935 = vmin.f32 %v933, 6.0
          %v936 = vmul.f32 %v925, %v934
          %v937 = vmul.f32 %v928, %v935
          %v938 = vmul.f32 %v936, 0.16666667
          %v939 = vmul.f32 %v937, 0.16666667
          %v940 = vld [vmem:[%s3] sm:$0xff]
          %v941 = vld [vmem:[%s4] sm:$0x1]
          %v943 = vperm.slane %v941, 0
          %vm945 = vcmask 64512
          %v947 = vsel %vm945, %v897, 0
          %v950 = vsel %vm945, %v898, 0
          %952 = vmatpush.msra.mxu0 0.0
          %953 = vmatpush.msra.mxu0 0.0
          %954 = vmatpush.msra.mxu0 0.0
          %955 = vmatpush.msra.mxu0 0.0
          %956 = vmatpush.msra.mxu0 0.0
          %957 = vmatpush.msra.mxu0 0.0
          %958 = vmatpush.msra.mxu0 0.0
          %959 = vmatpush.msra.mxu0 0.0
          %960 = vmatpush.msra.mxu0 0.0
          %961 = vmatpush.msra.mxu0 0.0
          %962 = vmatpush.msra.mxu0 0.0
          %963 = vmatpush.msra.mxu0 0.0
          %964 = vmatpush.msra.mxu0 0.0
          %965 = vmatpush.msra.mxu0 0.0
          %966 = vmatpush.msra.mxu0 0.0
          %967 = vmatpush.msra.mxu0 %v940
          %968 = vmatmul.f32.gmra.mxu0 %v947
          %v969 = vpop.f32.mrf.mxu0
          %v970 = vadd.f32 %v943, %v969
          %971 = vmatmul.f32.gmra.mxu0 %v950
          %v972 = vpop.f32.mrf.mxu0
          %v973 = vadd.f32 %v943, %v972
          %974 = vdwg.mxu0
          %v975 = vxor.u32 %v970, 2147483648
          %v976 = vxor.u32 %v973, 2147483648
          %v977 = vmul.f32 %v975, 1.442695
          %v978 = vpow.pop %v977
          %v979 = vmul.f32 %v976, 1.442695
          %v980 = vpow.pop %v979
          %v981 = vadd.f32 %v978, 1.0
          %v982 = vadd.f32 %v980, 1.0
          %v983 = vrcp.pop %v981
          %v984 = vmul.f32 %v981, %v983
          %v985 = vsub.f32 1.0, %v984
          %v986 = vmul.f32 %v983, %v985
          %v987 = vadd.f32 %v983, %v986
          %vm988 = vweird.f32 %v981
          %vm989 = vweird.f32 %v983
          %vm990 = vmor %vm988, %vm989
          %v991 = vsel %vm990, %v983, %v987
          %v992 = vand.u32 2147483647, %v981
          %vm993 = vcmp.eq.f32.partialorder %v992, 8.507059e+37
          %v994 = vand.u32 %v981, 2147483648
          %v995 = vor.u32 1.1754944e-38, %v994
          %v996 = vsel %vm993, %v995, %v991
          %v997 = vmul.f32 1.0, %v996
          %v998 = vrcp.pop %v982
          %v999 = vmul.f32 %v982, %v998
          %v1000 = vsub.f32 1.0, %v999
          %v1001 = vmul.f32 %v998, %v1000
          %v1002 = vadd.f32 %v998, %v1001
          %vm1003 = vweird.f32 %v982
          %vm1004 = vweird.f32 %v998
          %vm1005 = vmor %vm1003, %vm1004
          %v1006 = vsel %vm1005, %v998, %v1002
          %v1007 = vand.u32 2147483647, %v982
          %vm1008 = vcmp.eq.f32.partialorder %v1007, 8.507059e+37
          %v1009 = vand.u32 %v982, 2147483648
          %v1010 = vor.u32 1.1754944e-38, %v1009
          %v1011 = vsel %vm1008, %v1010, %v1006
          %v1012 = vmul.f32 1.0, %v1011
          %v1013 = vld [vmem:[%s5] sm:$0xff]
          %v1014 = vld [vmem:[%s6] sm:$0x1]
          %v1016 = vperm.slane %v1014, 0
          %v1019 = vsel %vm945, %v938, 0
          %v1022 = vsel %vm945, %v939, 0
          %1024 = vmatpush.msra.mxu0 0.0
          %1025 = vmatpush.msra.mxu0 0.0
          %1026 = vmatpush.msra.mxu0 0.0
          %1027 = vmatpush.msra.mxu0 0.0
          %1028 = vmatpush.msra.mxu0 0.0
          %1029 = vmatpush.msra.mxu0 0.0
          %1030 = vmatpush.msra.mxu0 0.0
          %1031 = vmatpush.msra.mxu0 0.0
          %1032 = vmatpush.msra.mxu0 0.0
          %1033 = vmatpush.msra.mxu0 0.0
          %1034 = vmatpush.msra.mxu0 0.0
          %1035 = vmatpush.msra.mxu0 0.0
          %1036 = vmatpush.msra.mxu0 0.0
          %1037 = vmatpush.msra.mxu0 0.0
          %1038 = vmatpush.msra.mxu0 0.0
          %1039 = vmatpush.msra.mxu0 %v1013
          %1040 = vmatmul.f32.gmra.mxu0 %v1019
          %v1041 = vpop.f32.mrf.mxu0
          %v1042 = vadd.f32 %v1016, %v1041
          %1043 = vmatmul.f32.gmra.mxu0 %v1022
          %v1044 = vpop.f32.mrf.mxu0
          %v1045 = vadd.f32 %v1016, %v1044
          %1046 = vdwg.mxu0
          %v1047 = vxor.u32 %v1042, 2147483648
          %v1048 = vxor.u32 %v1045, 2147483648
          %v1049 = vmul.f32 %v1047, 1.442695
          %v1050 = vpow.pop %v1049
          %v1051 = vmul.f32 %v1048, 1.442695
          %v1052 = vpow.pop %v1051
          %v1053 = vadd.f32 %v1050, 1.0
          %v1054 = vadd.f32 %v1052, 1.0
          %v1055 = vrcp.pop %v1053
          %v1056 = vmul.f32 %v1053, %v1055
          %v1057 = vsub.f32 1.0, %v1056
          %v1058 = vmul.f32 %v1055, %v1057
          %v1059 = vadd.f32 %v1055, %v1058
          %vm1060 = vweird.f32 %v1053
          %vm1061 = vweird.f32 %v1055
          %vm1062 = vmor %vm1060, %vm1061
          %v1063 = vsel %vm1062, %v1055, %v1059
          %v1064 = vand.u32 2147483647, %v1053
          %vm1065 = vcmp.eq.f32.partialorder %v1064, 8.507059e+37
          %v1066 = vand.u32 %v1053, 2147483648
          %v1067 = vor.u32 1.1754944e-38, %v1066
          %v1068 = vsel %vm1065, %v1067, %v1063
          %v1069 = vmul.f32 1.0, %v1068
          %v1070 = vrcp.pop %v1054
          %v1071 = vmul.f32 %v1054, %v1070
          %v1072 = vsub.f32 1.0, %v1071
          %v1073 = vmul.f32 %v1070, %v1072
          %v1074 = vadd.f32 %v1070, %v1073
          %vm1075 = vweird.f32 %v1054
          %vm1076 = vweird.f32 %v1070
          %vm1077 = vmor %vm1075, %vm1076
          %v1078 = vsel %vm1077, %v1070, %v1074
          %v1079 = vand.u32 2147483647, %v1054
          %vm1080 = vcmp.eq.f32.partialorder %v1079, 8.507059e+37
          %v1081 = vand.u32 %v1054, 2147483648
          %v1082 = vor.u32 1.1754944e-38, %v1081
          %v1083 = vsel %vm1080, %v1082, %v1078
          %v1084 = vmul.f32 1.0, %v1083
          %1085 = vxpose.xlu0.b32.start [1/16] %v997, 128
          %1086 = vxpose.xlu0.b32.cont [2/16] %v1012, 128
          %1087 = vxpose.xlu0.b32.cont [3/16] 0.0, 128
          %1088 = vxpose.xlu0.b32.cont [4/16] 0.0, 128
          %1089 = vxpose.xlu0.b32.cont [5/16] 0.0, 128
          %1090 = vxpose.xlu0.b32.cont [6/16] 0.0, 128
          %1091 = vxpose.xlu0.b32.cont [7/16] 0.0, 128
          %1092 = vxpose.xlu0.b32.cont [8/16] 0.0, 128
          %1093 = vxpose.xlu0.b32.cont [9/16] 0.0, 128
          %1094 = vxpose.xlu0.b32.cont [10/16] 0.0, 128
          %1095 = vxpose.xlu0.b32.cont [11/16] 0.0, 128
          %1096 = vxpose.xlu0.b32.cont [12/16] 0.0, 128
          %1097 = vxpose.xlu0.b32.cont [13/16] 0.0, 128
          %1098 = vxpose.xlu0.b32.cont [14/16] 0.0, 128
          %1099 = vxpose.xlu0.b32.cont [15/16] 0.0, 128
          %1100 = vxpose.xlu0.b32.end [16/16] 0.0, 128
          %v1101 = vpop.trf.xlu0
          %v1102 = vpop.trf.xlu0
          %v1103 = vpop.trf.xlu0
          %v1104 = vpop.trf.xlu0
          %v1105 = vpop.trf.xlu0
          %v1106 = vpop.trf.xlu0
          %v1107 = vpop.trf.xlu0
          %v1108 = vpop.trf.xlu0
          %v1109 = vpop.trf.xlu0
          %v1110 = vpop.trf.xlu0
          %v1111 = vpop.trf.xlu0
          %v1112 = vpop.trf.xlu0
          %v1113 = vpop.trf.xlu0
          %v1114 = vpop.trf.xlu0
          %v1115 = vpop.trf.xlu0
          %v1116 = vpop.trf.xlu0
          %1117 = vst.msk [vmem:[%s345] sm:$0xff] %vm393, %v1101
          %1118 = vst.msk [vmem:[%s345 + $0x8] sm:$0xff] %vm393, %v1102
          %1119 = vxpose.xlu0.b32.start [1/16] %v1069, 128
          %1120 = vxpose.xlu0.b32.cont [2/16] %v1084, 128
          %1121 = vxpose.xlu0.b32.cont [3/16] 0.0, 128
          %1122 = vxpose.xlu0.b32.cont [4/16] 0.0, 128
          %1123 = vxpose.xlu0.b32.cont [5/16] 0.0, 128
          %1124 = vxpose.xlu0.b32.cont [6/16] 0.0, 128
          %1125 = vxpose.xlu0.b32.cont [7/16] 0.0, 128
          %1126 = vxpose.xlu0.b32.cont [8/16] 0.0, 128
          %1127 = vxpose.xlu0.b32.cont [9/16] 0.0, 128
          %1128 = vxpose.xlu0.b32.cont [10/16] 0.0, 128
          %1129 = vxpose.xlu0.b32.cont [11/16] 0.0, 128
          %1130 = vxpose.xlu0.b32.cont [12/16] 0.0, 128
          %1131 = vxpose.xlu0.b32.cont [13/16] 0.0, 128
          %1132 = vxpose.xlu0.b32.cont [14/16] 0.0, 128
          %1133 = vxpose.xlu0.b32.cont [15/16] 0.0, 128
          %1134 = vxpose.xlu0.b32.end [16/16] 0.0, 128
          %v1135 = vpop.trf.xlu0
          %v1136 = vpop.trf.xlu0
          %v1137 = vpop.trf.xlu0
          %v1138 = vpop.trf.xlu0
          %v1139 = vpop.trf.xlu0
          %v1140 = vpop.trf.xlu0
          %v1141 = vpop.trf.xlu0
          %v1142 = vpop.trf.xlu0
          %v1143 = vpop.trf.xlu0
          %v1144 = vpop.trf.xlu0
          %v1145 = vpop.trf.xlu0
          %v1146 = vpop.trf.xlu0
          %v1147 = vpop.trf.xlu0
          %v1148 = vpop.trf.xlu0
          %v1149 = vpop.trf.xlu0
          %v1150 = vpop.trf.xlu0
          %1151 = vst.msk [vmem:[%s352] sm:$0xff] %vm393, %v1135
          %1152 = vst.msk [vmem:[%s352 + $0x8] sm:$0xff] %vm393, %v1136
        $region60: #{tpu_custom_call.1} parent=47 // pred_fallthru
          _
        %s1153 = sand.u32 %s203, 1
        %s1154 = scalar_lea.sflag [#allocation6], %s1153
        %s1155 = sand.u32 %s203, 1
        %s1156 = smul.addr %s1155, 16
        %s1157 = scalar_lea.vmem [#allocation7], %s1156
        %s1158 = sand.u32 %s229, 1
        %s1159 = scalar_lea.sflag [#allocation9], %s1158
        %s1160 = sand.u32 %s229, 1
        %s1161 = smul.addr %s1160, 16
        %s1162 = scalar_lea.vmem [#allocation8], %s1161
        // Predicated region
        $region61: #{tpu_custom_call.1} parent=47 // pred_check
          %p1163 = pneg %p213
        $region62: #{tpu_custom_call.1} parent=47 // pred_check_branch
          %1165 = sbr.rel (%p1163) target = $region64
        $region63: #{tpu_custom_call.1} parent=47 // pred_region
          %1167 = vsyncadd %s1154, 0
          %s1168 = smul.addr %s33, 2
          %s1169 = smul.addr %s1168, 8
          %s1170 = scalar_lea.hbm %s7, %s1169
          %s1171 = sshll.u32 %s1157, 4
          %s1172 = int_to_ptr.vmem [resolvable:$true] %s1171
          %s1173 = sshll.u32 %s1170, 4
          %s1174 = int_to_ptr.hbm [resolvable:$true] %s1173
          %1179 = dma.vmem_to_hbm [thread:$0]  %s1172, 256, %s1174, %s1154, 128, 128, 8
        $region64: #{tpu_custom_call.1} parent=47 // pred_fallthru
          _
        // Predicated region
        $region65: #{tpu_custom_call.1} parent=47 // pred_check
          %p1180 = pneg %p239
        $region66: #{tpu_custom_call.1} parent=47 // pred_check_branch
          %1182 = sbr.rel (%p1180) target = $region68
        $region67: #{tpu_custom_call.1} parent=47 // pred_region
          %1184 = vsyncadd %s1159, 0
          %s1185 = smul.addr %s33, 2
          %s1186 = smul.addr %s1185, 8
          %s1187 = scalar_lea.hbm %s8, %s1186
          %s1188 = sshll.u32 %s1162, 4
          %s1189 = int_to_ptr.vmem [resolvable:$true] %s1188
          %s1190 = sshll.u32 %s1187, 4
          %s1191 = int_to_ptr.hbm [resolvable:$true] %s1190
          %1196 = dma.vmem_to_hbm [thread:$0]  %s1189, 256, %s1191, %s1159, 128, 128, 8
        $region68: #{tpu_custom_call.1} parent=47 // pred_fallthru
          _
      $region48: #{tpu_custom_call.1} parent=5 // pred_fallthru
        _
      %p1197 = scmp.le.s32.totalorder 2, %s24
      // Predicated region
      $region69: #{tpu_custom_call.1} parent=5 // pred_check
        %p1198 = pneg %p1197
      $region70: #{tpu_custom_call.1} parent=5 // pred_check_branch
        %1200 = sbr.rel (%p1198) target = $region72
      $region71: #{tpu_custom_call.1} parent=5 // pred_region
        %s1201 = ssub.s32 %s24, 2
        // Predicated region
        $region73: #{tpu_custom_call.1} parent=71 // pred_check
          %p1202 = pneg %p219
        $region74: #{tpu_custom_call.1} parent=71 // pred_check_branch
          %1204 = sbr.rel (%p1202) target = $region76
        $region75: #{tpu_custom_call.1} parent=71 // pred_region
          %s1205 = sand.u32 %s204, 1
          %s1206 = scalar_lea.sflag [#allocation6], %s1205
          %s1207 = sand.u32 %s204, 1
          %s1208 = smul.addr %s1207, 16
          %s1209 = scalar_lea.vmem [#allocation7], %s1208
          %1211 = dma.done %s1206, 256
        $region76: #{tpu_custom_call.1} parent=71 // pred_fallthru
          _
        // Predicated region
        $region77: #{tpu_custom_call.1} parent=71 // pred_check
          %p1212 = pneg %p245
        $region78: #{tpu_custom_call.1} parent=71 // pred_check_branch
          %1214 = sbr.rel (%p1212) target = $region80
        $region79: #{tpu_custom_call.1} parent=71 // pred_region
          %s1215 = sand.u32 %s230, 1
          %s1216 = scalar_lea.sflag [#allocation9], %s1215
          %s1217 = sand.u32 %s230, 1
          %s1218 = smul.addr %s1217, 16
          %s1219 = scalar_lea.vmem [#allocation8], %s1218
          %1221 = dma.done %s1216, 256
        $region80: #{tpu_custom_call.1} parent=71 // pred_fallthru
          _
      $region72: #{tpu_custom_call.1} parent=5 // pred_fallthru
        _
    $region6: #{tpu_custom_call.1} parent=1 // loop_footer
      %s28 = sadd.s32 1, %s24
    $region7: #{tpu_custom_call.1} parent=1 // loop_footer_branch
      %23 = sbr.rel target = $region3
    $region8: #{tpu_custom_call.1} parent=1 // loop_exit
      _
    %1222 = vsyncpa [#allocation5], 1
    %s1223 = scalar_lea.sflag [#allocation5], 1
    %1224 = vsyncpa %s1223, 1
    %1225 = vsyncpa [#allocation6], 1
    %s1226 = scalar_lea.sflag [#allocation6], 1
    %1227 = vsyncpa %s1226, 1
    %1228 = vsyncpa [#allocation9], 1
    %s1229 = scalar_lea.sflag [#allocation9], 1
    %1230 = vsyncpa %s1229, 1

</llo_original>
